<compile_context>
chip_gen: v7x
topology: tpu7x:2x2x1
jax: 0.10.0
libtpu: 0.0.40
codegen_flags: <defaults>
</compile_context>

<pallas_src>
import jax
import jax.numpy as jnp
from jax.experimental import pallas as pl
from jax.experimental.pallas import tpu as pltpu

# ----------------------------- hyper-parameters ------------------------------
BATCH = 8            # batch size == number of graph nodes (forward concatenates them)
SEQ = 8              # time steps for the numeric (ContiFormer) branch
NUM_FEAT = 16        # num_input_features
HIDDEN = 32          # hidden_dim
IMAGE_EMBED = 32     # image_embed_dim (must equal hidden_dim for the gate concat)
GNN_EMBED = 16       # gnn_embed_dim
NUM_CLASSES = 4
IMG_C, IMG_H, IMG_W = 3, 16, 16
IMG_FLAT = IMG_C * IMG_H * IMG_W      # 768
VIT_OUT = 1000       # vit_b_16 head width (folded away at init)
OUT_PAD = 128        # lane-dense padding of the (B, NUM_CLASSES) output
NUM_EDGES = 16
NEG_SLOPE = 0.2      # GATConv LeakyReLU slope
NEG_INF = -1e30

SLAB_A_W = HIDDEN    # 32-wide slab
SLAB_B_W = 128       # 128-wide slab
SLAB_C_W = 256       # 256-wide slab


# ------------------------- parameter-slab layouts -----------------------------
def _layout(entries):
    off, table = 0, {}
    for name, rows in entries:
        table[name] = (off, rows)
        off += rows
    return table, off


SLAB_A_ENTRIES = [                      # fp32, width 32
    ("w_enc_fold", SEQ * NUM_FEAT),     # 128  mean-over-time folded encoder weight
    ("w_num_fc",   HIDDEN),             # 32
    ("w_img_fold", IMG_FLAT),           # 768  ViT stand-in folded into image_fc
    ("gat1_attn",  4 * HIDDEN),         # 128  cols 0..3 = a_src blkdiag, 4..7 = a_dst
    ("gat2_attn",  4 * HIDDEN),         # 128  rows 64.. zero; cols 0..1 src, 2..3 dst
    ("gat2_avg",   2 * HIDDEN),         # 64   stacked identity / 2 (head mean)
    ("gate_w1",    3 * HIDDEN),         # 96   fused Linear(3H -> H)
    ("gate_w2",    HIDDEN),             # 32   cols 3.. zero
    ("b_enc", 1), ("b_num_fc", 1), ("b_img", 1),
    ("gat2_b", 1), ("gate_b1", 1), ("gate_b2", 1),
]
SLAB_A_LAYOUT, SLAB_A_ROWS = _layout(SLAB_A_ENTRIES)

SLAB_B_ENTRIES = [                      # fp32, width 128
    ("gat1_w", GNN_EMBED),              # 16
    ("gat2_w", 4 * HIDDEN),             # 128  cols 64.. zero
    ("cls_w2", 256),                    # 256
    ("cls_w3", 128),                    # 128  cols NUM_CLASSES.. zero
    ("gat1_b", 1), ("cls_b2", 1), ("cls_b3", 1),
]
SLAB_B_LAYOUT, SLAB_B_ROWS = _layout(SLAB_B_ENTRIES)

SLAB_C_ENTRIES = [("cls_w1", HIDDEN), ("cls_b1", 1)]    # fp32, width 256
SLAB_C_LAYOUT, SLAB_C_ROWS = _layout(SLAB_C_ENTRIES)


# ------------------------------ kernel helpers --------------------------------
def _dot(a, b):
    """fp32 MXU matmul (fp32 operands, fp32 accumulation)."""
    return jnp.dot(a, b, preferred_element_type=jnp.float32)


def _slab(ref, layout, name, width=None):
    """Static-view load of one parameter out of a packed slab."""
    off, rows = layout[name]
    v = ref[off:off + rows, :]
    return v if width is None else v[:, :width]


def _gat_layer(x, adj_bias_stack, w, attn, heads, dim):
    """Dense multi-head GATConv (PyG semantics: self-loops, LeakyReLU(0.2),
    per-target softmax over sources, concat over heads).  Heads are stacked
    along sublanes so mask/max/exp/sum/softmax run ONCE for all heads."""
    n = x.shape[0]
    xw = _dot(x, w)                                    # (n, >= heads*dim)
    s = _dot(xw, attn)                                 # (n, 2*heads): [a_src | a_dst]
    s_src_t = jnp.transpose(s[:, :heads])              # (heads, n)
    s_dst = s[:, heads:2 * heads]                      # (n, heads)
    sc = jnp.concatenate(                              # (heads*n, n): [h*n+i, j]
        [s_dst[:, h:h + 1] + s_src_t[h:h + 1, :] for h in range(heads)], axis=0)
    sc = jnp.where(sc > 0, sc, NEG_SLOPE * sc)         # LeakyReLU once for all heads
    sc = sc + adj_bias_stack                           # hoisted additive adjacency mask
    sc = sc - jnp.max(sc, axis=1, keepdims=True)
    e = jnp.exp(sc)                                    # single EUP pass for all heads
    alpha = e / jnp.sum(e, axis=1, keepdims=True)      # exact softmax (matches PyTorch)
    outs = [_dot(alpha[h * n:(h + 1) * n, :], xw[:, h * dim:(h + 1) * dim])
            for h in range(heads)]
    return jnp.concatenate(outs, axis=1)               # (n, heads*dim)  concat over heads


# -------------------------------- fused kernel --------------------------------
def _fused_forward_kernel(adj_ref, num_ref, img_ref, node_ref,
                          a_ref, b_ref, c_ref, o_ref):
    n = node_ref.shape[0]

    # ---- carve the packed bias rows (one aligned block read per slab) ----
    a_bias_off = SLAB_A_LAYOUT["b_enc"][0]
    bias_a = a_ref[a_bias_off:a_bias_off + 6, :]                     # (6, 32)
    b_enc, b_num_fc, b_img = bias_a[0:1], bias_a[1:2], bias_a[2:3]
    gat2_b, gate_b1, gate_b2 = bias_a[3:4], bias_a[4:5], bias_a[5:6]

    b_bias_off = SLAB_B_LAYOUT["gat1_b"][0]
    bias_b = b_ref[b_bias_off:b_bias_off + 3, :]                     # (3, 128)
    gat1_b, cls_b2, cls_b3 = bias_b[0:1], bias_b[1:2], bias_b[2:3]

    # ---- numeric branch ----
    # TODO(synk): mean-over-time (folded into w_enc_fold) + linear + tanh stand-in
    # for the pretrained ContiFormer encoder.
    h1 = jnp.tanh(_dot(num_ref[...], _slab(a_ref, SLAB_A_LAYOUT, "w_enc_fold")) + b_enc)
    num_embed = _dot(h1, _slab(a_ref, SLAB_A_LAYOUT, "w_num_fc")) + b_num_fc     # (B, H)

    # ---- image branch: ViT stand-in algebraically folded into image_fc ----
    # TODO(synk): flatten + linear stand-in for the pretrained torchvision vit_b_16.
    image_embed = _dot(img_ref[...], _slab(a_ref, SLAB_A_LAYOUT, "w_img_fold")) + b_img

    # ---- graph branch: two dense-masked GATConv layers ----
    adj4 = adj_ref[...]                                              # (4n, n) additive mask
    g1 = _gat_layer(node_ref[...], adj4,
                    _slab(b_ref, SLAB_B_LAYOUT, "gat1_w"),
                    _slab(a_ref, SLAB_A_LAYOUT, "gat1_attn", width=8),
                    heads=4, dim=HIDDEN) + gat1_b                    # (n, 4H) concat
    g2c = _gat_layer(g1, adj4[:2 * n, :],
                     _slab(b_ref, SLAB_B_LAYOUT, "gat2_w"),
                     _slab(a_ref, SLAB_A_LAYOUT, "gat2_attn", width=4),
                     heads=2, dim=HIDDEN)                            # (n, 2H) concat
    gnn_embed = _dot(g2c, _slab(a_ref, SLAB_A_LAYOUT, "gat2_avg")) + gat2_b   # head mean

    # ---- gate: fused Linear(3H->H), ReLU, Linear(H->3, lane-padded), Softmax ----
    cat = jnp.concatenate([num_embed, image_embed, gnn_embed], axis=1)        # (B, 3H)
    g = jnp.maximum(_dot(cat, _slab(a_ref, SLAB_A_LAYOUT, "gate_w1")) + gate_b1, 0.0)
    glog = _dot(g, _slab(a_ref, SLAB_A_LAYOUT, "gate_w2")) + gate_b2          # pads: -1e30
    glog = glog - jnp.max(glog, axis=1, keepdims=True)
    ge = jnp.exp(glog)
    fw = ge / jnp.sum(ge, axis=1, keepdims=True)                     # exact gate softmax

    # ---- weighted fusion ----
    z = fw[:, 0:1] * num_embed + fw[:, 1:2] * image_embed + fw[:, 2:3] * gnn_embed

    # ---- classifier: Linear->ReLU->Dropout(id)->Linear->ReLU->Linear->Softmax ----
    c1 = jnp.maximum(_dot(z, _slab(c_ref, SLAB_C_LAYOUT, "cls_w1"))
                     + _slab(c_ref, SLAB_C_LAYOUT, "cls_b1"), 0.0)            # (B, 256)
    c2 = jnp.maximum(_dot(c1, _slab(b_ref, SLAB_B_LAYOUT, "cls_w2")) + cls_b2, 0.0)
    # cls_w3/cls_b3 are lane-padded to 128 classes; padded columns carry bias -1e30
    # so their softmax probability is exactly 0 and the real 4 classes are unchanged.
    logits = _dot(c2, _slab(b_ref, SLAB_B_LAYOUT, "cls_w3")) + cls_b3         # (B, 128)
    logits = logits - jnp.max(logits, axis=1, keepdims=True)
    el = jnp.exp(logits)
    o_ref[...] = el / jnp.sum(el, axis=1, keepdims=True)             # exact class softmax


# ------------------------------ pallas wrapper ---------------------------------
def accident_prediction_forward(params, num_input, image_input, edge_index, node_features):
    b = num_input.shape[0]
    n = node_features.shape[0]
    num2d = num_input.reshape(b, SEQ * NUM_FEAT).astype(jnp.float32)
    img_flat = image_input.reshape(b, IMG_FLAT).astype(jnp.float32)
    node = node_features.astype(jnp.float32)

    # Dense additive adjacency mask (row = target, col = source) with self-loops
    # (PyG GATConv default), built with plain jnp OUTSIDE the kernel and pre-tiled
    # for the 4-head layer so the kernel never touches edge_index scalars.
    adj = jnp.eye(n, dtype=bool).at[edge_index[1], edge_index[0]].set(True)
    adj_bias = jnp.where(adj, 0.0, NEG_INF).astype(jnp.float32)
    adj_bias4 = jnp.tile(adj_bias, (4, 1))                           # (4n, n)

    out_padded = pl.pallas_call(
        _fused_forward_kernel,
        out_shape=jax.ShapeDtypeStruct((b, OUT_PAD), jnp.float32),
        in_specs=[pl.BlockSpec(memory_space=pltpu.MemorySpace.VMEM)] * 7,
        out_specs=pl.BlockSpec(memory_space=pltpu.MemorySpace.VMEM),
    )(adj_bias4, num2d, img_flat, node,
      params["slab_a"], params["slab_b"], params["slab_c"])
    # lane-dense (B, 128) store inside the kernel; slice to the real class count here.
    return out_padded[:, :NUM_CLASSES]
    # TODO(synk): for large batches, add a grid over 128/256-row batch tiles with
    # dimension_semantics=("parallel",) and index_map lambda i: (0, 0) on the slabs
    # so the ~0.5 MiB of weights stays resident and v7x's second TensorCore is used.


# ------------------------------ parameter init --------------------------------
def init_params(key):
    ks = iter(jax.random.split(key, 32))

    def dense(shape, scale=0.1):
        return scale * jax.random.normal(next(ks), shape, jnp.float32)

    def block_diag(vecs):
        # (heads, D) attention vectors -> block-diagonal (heads*D, heads) matrix
        heads, d = vecs.shape
        m = jnp.zeros((heads * d, heads), jnp.float32)
        for h in range(heads):
            m = m.at[h * d:(h + 1) * d, h].set(vecs[h])
        return m

    def pad_cols(x, width):
        return jnp.zeros((x.shape[0], width), x.dtype).at[:, :x.shape[1]].set(x)

    def pad_rows(x, rows):
        return jnp.zeros((rows, x.shape[1]), x.dtype).at[:x.shape[0], :].set(x)

    # --- numeric branch (ContiFormer stand-in) ---
    w_enc = dense((NUM_FEAT, HIDDEN))
    # fold mean over SEQ time steps: x.reshape(B,S*F) @ tile(W,(S,1))/S == mean_t(x) @ W
    w_enc_fold = jnp.tile(w_enc, (SEQ, 1)) / SEQ
    b_enc = dense((1, HIDDEN))
    w_num_fc = dense((HIDDEN, HIDDEN)); b_num_fc = dense((1, HIDDEN))

    # --- image branch: ViT stand-in (flatten -> 1000) folded into image_fc ---
    w_vit = dense((IMG_FLAT, VIT_OUT), 0.02); b_vit = dense((1, VIT_OUT))
    w_img_fc = dense((VIT_OUT, IMAGE_EMBED), 0.02); b_img_fc = dense((1, IMAGE_EMBED))
    w_img_fold = w_vit @ w_img_fc                      # exact fold of two linear layers
    b_img = b_vit @ w_img_fc + b_img_fc

    # --- GATConv(gnn_embed -> hidden, heads=4, concat=True) ---
    gat1_w = dense((GNN_EMBED, 4 * HIDDEN)); gat1_b = dense((1, 4 * HIDDEN))
    gat1_attn = jnp.concatenate([block_diag(dense((4, HIDDEN))),      # a_src
                                 block_diag(dense((4, HIDDEN)))], axis=1)   # (128, 8)

    # --- GATConv(4*hidden -> hidden, heads=2, concat=False -> head mean) ---
    gat2_w = dense((4 * HIDDEN, 2 * HIDDEN)); gat2_b = dense((1, HIDDEN))
    gat2_attn = jnp.concatenate([block_diag(dense((2, HIDDEN))),
                                 block_diag(dense((2, HIDDEN)))], axis=1)   # (64, 4)
    gat2_avg = jnp.tile(jnp.eye(HIDDEN, dtype=jnp.float32), (2, 1)) / 2.0   # head mean

    # --- gate: Linear(3H->H) as one fused weight, ReLU, Linear(H->3), Softmax ---
    gate_w1 = dense((3 * HIDDEN, HIDDEN)); gate_b1 = dense((1, HIDDEN))
    gate_w2 = dense((HIDDEN, 3)); gate_b2 = dense((1, 3))

    # --- classifier: H -> 256 -> 128 -> num_classes ---
    cls_w1 = dense((HIDDEN, 256)); cls_b1 = dense((1, 256))
    cls_w2 = dense((256, 128)); cls_b2 = dense((1, 128))
    cls_w3 = dense((128, NUM_CLASSES)); cls_b3 = dense((1, NUM_CLASSES))

    # ------------------ pack everything into three VMEM slabs ------------------
    parts_a = {
        "w_enc_fold": w_enc_fold,
        "w_num_fc": w_num_fc,
        "w_img_fold": w_img_fold,
        "gat1_attn": pad_cols(gat1_attn, SLAB_A_W),
        "gat2_attn": pad_rows(pad_cols(gat2_attn, SLAB_A_W), 4 * HIDDEN),
        "gat2_avg": gat2_avg,
        "gate_w1": gate_w1,
        "gate_w2": pad_cols(gate_w2, SLAB_A_W),
        "b_enc": b_enc, "b_num_fc": b_num_fc, "b_img": b_img,
        "gat2_b": gat2_b, "gate_b1": gate_b1,
        # padded gate-logit columns get bias -1e30 -> softmax prob exactly 0
        "gate_b2": jnp.full((1, SLAB_A_W), NEG_INF, jnp.float32).at[:, :3].set(gate_b2),
    }
    parts_b = {
        "gat1_w": gat1_w,
        "gat2_w": pad_cols(gat2_w, SLAB_B_W),
        "cls_w2": cls_w2,
        "cls_w3": pad_cols(cls_w3, SLAB_B_W),
        "gat1_b": gat1_b, "cls_b2": cls_b2,
        # padded class columns get bias -1e30 -> softmax prob exactly 0
        "cls_b3": jnp.full((1, SLAB_B_W), NEG_INF, jnp.float32).at[:, :NUM_CLASSES].set(cls_b3),
    }
    parts_c = {"cls_w1": cls_w1, "cls_b1": cls_b1}

    def pack(parts, entries, rows, width):
        slab = jnp.concatenate([parts[name] for name, _ in entries], axis=0)
        assert slab.shape == (rows, width), slab.shape
        return slab

    # NOTE: self.alpha of the original module is unused in forward(); omitted.
    return {
        "slab_a": pack(parts_a, SLAB_A_ENTRIES, SLAB_A_ROWS, SLAB_A_W),
        "slab_b": pack(parts_b, SLAB_B_ENTRIES, SLAB_B_ROWS, SLAB_B_W),
        "slab_c": pack(parts_c, SLAB_C_ENTRIES, SLAB_C_ROWS, SLAB_C_W),
    }


# ----------------------------------- main --------------------------------------
if __name__ == "__main__":
    root = jax.random.PRNGKey(0)
    k_par, k_num, k_img, k_node, k_src, k_dst = jax.random.split(root, 6)

    params = init_params(k_par)

    num_input = jax.random.normal(k_num, (BATCH, SEQ, NUM_FEAT), jnp.float32)
    image_input = jax.random.normal(k_img, (BATCH, IMG_C, IMG_H, IMG_W), jnp.float32)
    node_features = jax.random.normal(k_node, (BATCH, GNN_EMBED), jnp.float32)
    edge_index = jnp.stack([
        jax.random.randint(k_src, (NUM_EDGES,), 0, BATCH),
        jax.random.randint(k_dst, (NUM_EDGES,), 0, BATCH),
    ]).astype(jnp.int32)

    fwd = jax.jit(accident_prediction_forward)
    out = jax.block_until_ready(fwd(params, num_input, image_input, edge_index, node_features))

    assert out.shape == (BATCH, NUM_CLASSES)
    assert bool(jnp.all(jnp.isfinite(out)))
    # rows of the final softmax must sum to 1
    assert bool(jnp.allclose(jnp.sum(out, axis=1), 1.0, atol=1e-4))
    print("KERNEL_OK")
</pallas_src>

<mosaic_0001>
module attributes {stable_mosaic.version = 11 : i64} {
  func.func @_fused_forward_kernel(%arg0: memref<32x8xf32, #tpu.memory_space<vmem>>, %arg1: memref<8x128xf32, #tpu.memory_space<vmem>>, %arg2: memref<8x768xf32, #tpu.memory_space<vmem>>, %arg3: memref<8x16xf32, #tpu.memory_space<vmem>>, %arg4: memref<1382x32xf32, #tpu.memory_space<vmem>>, %arg5: memref<531x128xf32, #tpu.memory_space<vmem>>, %arg6: memref<33x256xf32, #tpu.memory_space<vmem>>, %arg7: memref<8x128xf32, #tpu.memory_space<vmem>>) attributes {dimension_semantics = [], scalar_prefetch = 0 : i64, scratch_operands = 0 : i64, tpu.core_type = #tpu.core_type<tc>} {
    %c1376 = arith.constant 1376 : index
    %c0 = arith.constant 0 : index
    %0 = vector.load %arg4[%c1376, %c0] : memref<1382x32xf32, #tpu.memory_space<vmem>>, vector<6x32xf32>
    %1 = vector.extract_strided_slice %0 {offsets = [0, 0], sizes = [1, 32], strides = [1, 1]} : vector<6x32xf32> to vector<1x32xf32>
    %2 = vector.extract_strided_slice %0 {offsets = [1, 0], sizes = [1, 32], strides = [1, 1]} : vector<6x32xf32> to vector<1x32xf32>
    %3 = vector.extract_strided_slice %0 {offsets = [2, 0], sizes = [1, 32], strides = [1, 1]} : vector<6x32xf32> to vector<1x32xf32>
    %4 = vector.extract_strided_slice %0 {offsets = [3, 0], sizes = [1, 32], strides = [1, 1]} : vector<6x32xf32> to vector<1x32xf32>
    %5 = vector.extract_strided_slice %0 {offsets = [4, 0], sizes = [1, 32], strides = [1, 1]} : vector<6x32xf32> to vector<1x32xf32>
    %6 = vector.extract_strided_slice %0 {offsets = [5, 0], sizes = [1, 32], strides = [1, 1]} : vector<6x32xf32> to vector<1x32xf32>
    %c528 = arith.constant 528 : index
    %c0_0 = arith.constant 0 : index
    %7 = vector.load %arg5[%c528, %c0_0] : memref<531x128xf32, #tpu.memory_space<vmem>>, vector<3x128xf32>
    %8 = vector.extract_strided_slice %7 {offsets = [0, 0], sizes = [1, 128], strides = [1, 1]} : vector<3x128xf32> to vector<1x128xf32>
    %9 = vector.extract_strided_slice %7 {offsets = [1, 0], sizes = [1, 128], strides = [1, 1]} : vector<3x128xf32> to vector<1x128xf32>
    %10 = vector.extract_strided_slice %7 {offsets = [2, 0], sizes = [1, 128], strides = [1, 1]} : vector<3x128xf32> to vector<1x128xf32>
    %c0_1 = arith.constant 0 : index
    %c0_2 = arith.constant 0 : index
    %11 = vector.load %arg1[%c0_1, %c0_2] : memref<8x128xf32, #tpu.memory_space<vmem>>, vector<8x128xf32>
    %c0_3 = arith.constant 0 : index
    %c0_4 = arith.constant 0 : index
    %12 = vector.load %arg4[%c0_3, %c0_4] : memref<1382x32xf32, #tpu.memory_space<vmem>>, vector<128x32xf32>
    %cst = arith.constant dense<0.000000e+00> : vector<8x32xf32>
    %13 = tpu.matmul %11, %12, %cst {dimension_numbers = #tpu.dot_dimension_numbers<[1], [0], [0], [1], [0, 0, 1, 1], [], []>} : vector<8x128xf32>, vector<128x32xf32>, vector<8x32xf32> -> vector<8x32xf32>
    %14 = vector.broadcast %1 : vector<1x32xf32> to vector<8x32xf32>
    %15 = arith.addf %13, %14 : vector<8x32xf32>
    %16 = math.tanh %15 : vector<8x32xf32>
    %c128 = arith.constant 128 : index
    %c0_5 = arith.constant 0 : index
    %17 = vector.load %arg4[%c128, %c0_5] : memref<1382x32xf32, #tpu.memory_space<vmem>>, vector<32x32xf32>
    %cst_6 = arith.constant dense<0.000000e+00> : vector<8x32xf32>
    %18 = tpu.matmul %16, %17, %cst_6 {dimension_numbers = #tpu.dot_dimension_numbers<[1], [0], [0], [1], [0, 0, 1, 1], [], []>} : vector<8x32xf32>, vector<32x32xf32>, vector<8x32xf32> -> vector<8x32xf32>
    %19 = vector.broadcast %2 : vector<1x32xf32> to vector<8x32xf32>
    %20 = arith.addf %18, %19 : vector<8x32xf32>
    %c0_7 = arith.constant 0 : index
    %c0_8 = arith.constant 0 : index
    %21 = vector.load %arg2[%c0_7, %c0_8] : memref<8x768xf32, #tpu.memory_space<vmem>>, vector<8x768xf32>
    %c160 = arith.constant 160 : index
    %c0_9 = arith.constant 0 : index
    %22 = vector.load %arg4[%c160, %c0_9] : memref<1382x32xf32, #tpu.memory_space<vmem>>, vector<768x32xf32>
    %cst_10 = arith.constant dense<0.000000e+00> : vector<8x32xf32>
    %23 = tpu.matmul %21, %22, %cst_10 {dimension_numbers = #tpu.dot_dimension_numbers<[1], [0], [0], [1], [0, 0, 1, 1], [], []>} : vector<8x768xf32>, vector<768x32xf32>, vector<8x32xf32> -> vector<8x32xf32>
    %24 = vector.broadcast %3 : vector<1x32xf32> to vector<8x32xf32>
    %25 = arith.addf %23, %24 : vector<8x32xf32>
    %c0_11 = arith.constant 0 : index
    %c0_12 = arith.constant 0 : index
    %26 = vector.load %arg0[%c0_11, %c0_12] : memref<32x8xf32, #tpu.memory_space<vmem>>, vector<32x8xf32>
    %c0_13 = arith.constant 0 : index
    %c0_14 = arith.constant 0 : index
    %27 = vector.load %arg3[%c0_13, %c0_14] : memref<8x16xf32, #tpu.memory_space<vmem>>, vector<8x16xf32>
    %c0_15 = arith.constant 0 : index
    %c0_16 = arith.constant 0 : index
    %28 = vector.load %arg5[%c0_15, %c0_16] : memref<531x128xf32, #tpu.memory_space<vmem>>, vector<16x128xf32>
    %c928 = arith.constant 928 : index
    %c0_17 = arith.constant 0 : index
    %29 = vector.load %arg4[%c928, %c0_17] : memref<1382x32xf32, #tpu.memory_space<vmem>>, vector<128x32xf32>
    %30 = vector.extract_strided_slice %29 {offsets = [0, 0], sizes = [128, 8], strides = [1, 1]} : vector<128x32xf32> to vector<128x8xf32>
    %cst_18 = arith.constant dense<0.000000e+00> : vector<8x128xf32>
    %31 = tpu.matmul %27, %28, %cst_18 {dimension_numbers = #tpu.dot_dimension_numbers<[1], [0], [0], [1], [0, 0, 1, 1], [], []>} : vector<8x16xf32>, vector<16x128xf32>, vector<8x128xf32> -> vector<8x128xf32>
    %cst_19 = arith.constant dense<0.000000e+00> : vector<8x8xf32>
    %32 = tpu.matmul %31, %30, %cst_19 {dimension_numbers = #tpu.dot_dimension_numbers<[1], [0], [0], [1], [0, 0, 1, 1], [], []>} : vector<8x128xf32>, vector<128x8xf32>, vector<8x8xf32> -> vector<8x8xf32>
    %33 = vector.extract_strided_slice %32 {offsets = [0, 0], sizes = [8, 4], strides = [1, 1]} : vector<8x8xf32> to vector<8x4xf32>
    %34 = tpu.transpose %33, [1, 0] : vector<8x4xf32> -> vector<4x8xf32>
    %35 = vector.extract_strided_slice %32 {offsets = [0, 4], sizes = [8, 4], strides = [1, 1]} : vector<8x8xf32> to vector<8x4xf32>
    %36 = vector.extract_strided_slice %35 {offsets = [0, 0], sizes = [8, 1], strides = [1, 1]} : vector<8x4xf32> to vector<8x1xf32>
    %37 = vector.extract_strided_slice %34 {offsets = [0, 0], sizes = [1, 8], strides = [1, 1]} : vector<4x8xf32> to vector<1x8xf32>
    %38 = vector.broadcast %36 : vector<8x1xf32> to vector<8x8xf32>
    %39 = vector.broadcast %37 : vector<1x8xf32> to vector<8x8xf32>
    %40 = arith.addf %38, %39 : vector<8x8xf32>
    %41 = vector.extract_strided_slice %35 {offsets = [0, 1], sizes = [8, 1], strides = [1, 1]} : vector<8x4xf32> to vector<8x1xf32>
    %42 = vector.extract_strided_slice %34 {offsets = [1, 0], sizes = [1, 8], strides = [1, 1]} : vector<4x8xf32> to vector<1x8xf32>
    %43 = vector.broadcast %41 : vector<8x1xf32> to vector<8x8xf32>
    %44 = vector.broadcast %42 : vector<1x8xf32> to vector<8x8xf32>
    %45 = arith.addf %43, %44 : vector<8x8xf32>
    %46 = vector.extract_strided_slice %35 {offsets = [0, 2], sizes = [8, 1], strides = [1, 1]} : vector<8x4xf32> to vector<8x1xf32>
    %47 = vector.extract_strided_slice %34 {offsets = [2, 0], sizes = [1, 8], strides = [1, 1]} : vector<4x8xf32> to vector<1x8xf32>
    %48 = vector.broadcast %46 : vector<8x1xf32> to vector<8x8xf32>
    %49 = vector.broadcast %47 : vector<1x8xf32> to vector<8x8xf32>
    %50 = arith.addf %48, %49 : vector<8x8xf32>
    %51 = vector.extract_strided_slice %35 {offsets = [0, 3], sizes = [8, 1], strides = [1, 1]} : vector<8x4xf32> to vector<8x1xf32>
    %52 = vector.extract_strided_slice %34 {offsets = [3, 0], sizes = [1, 8], strides = [1, 1]} : vector<4x8xf32> to vector<1x8xf32>
    %53 = vector.broadcast %51 : vector<8x1xf32> to vector<8x8xf32>
    %54 = vector.broadcast %52 : vector<1x8xf32> to vector<8x8xf32>
    %55 = arith.addf %53, %54 : vector<8x8xf32>
    %56 = tpu.concatenate %40, %45, %50, %55 in 0 : vector<8x8xf32>, vector<8x8xf32>, vector<8x8xf32>, vector<8x8xf32> -> vector<32x8xf32>
    %cst_20 = arith.constant 0.000000e+00 : f32
    %57 = vector.broadcast %cst_20 : f32 to vector<32x8xf32>
    %58 = arith.cmpf ogt, %56, %57 : vector<32x8xf32>
    %cst_21 = arith.constant 2.000000e-01 : f32
    %59 = vector.broadcast %cst_21 : f32 to vector<32x8xf32>
    %60 = arith.mulf %59, %56 : vector<32x8xf32>
    %61 = arith.select %58, %56, %60 : vector<32x8xi1>, vector<32x8xf32>
    %62 = arith.addf %61, %26 : vector<32x8xf32>
    %cst_22 = arith.constant dense<0xFF800000> : vector<32xf32>
    %63 = vector.multi_reduction <maximumf>, %62, %cst_22 [1] : vector<32x8xf32> to vector<32xf32>
    %64 = vector.shape_cast %63 : vector<32xf32> to vector<32x1xf32>
    %65 = vector.broadcast %64 : vector<32x1xf32> to vector<32x8xf32>
    %66 = arith.subf %62, %65 : vector<32x8xf32>
    %67 = math.exp %66 : vector<32x8xf32>
    %cst_23 = arith.constant dense<0.000000e+00> : vector<32xf32>
    %68 = vector.multi_reduction <add>, %67, %cst_23 [1] : vector<32x8xf32> to vector<32xf32>
    %69 = vector.shape_cast %68 : vector<32xf32> to vector<32x1xf32>
    %70 = vector.broadcast %69 : vector<32x1xf32> to vector<32x8xf32>
    %71 = arith.divf %67, %70 : vector<32x8xf32>
    %72 = vector.extract_strided_slice %71 {offsets = [0, 0], sizes = [8, 8], strides = [1, 1]} : vector<32x8xf32> to vector<8x8xf32>
    %73 = vector.extract_strided_slice %31 {offsets = [0, 0], sizes = [8, 32], strides = [1, 1]} : vector<8x128xf32> to vector<8x32xf32>
    %cst_24 = arith.constant dense<0.000000e+00> : vector<8x32xf32>
    %74 = tpu.matmul %72, %73, %cst_24 {dimension_numbers = #tpu.dot_dimension_numbers<[1], [0], [0], [1], [0, 0, 1, 1], [], []>} : vector<8x8xf32>, vector<8x32xf32>, vector<8x32xf32> -> vector<8x32xf32>
    %75 = vector.extract_strided_slice %71 {offsets = [8, 0], sizes = [8, 8], strides = [1, 1]} : vector<32x8xf32> to vector<8x8xf32>
    %76 = vector.extract_strided_slice %31 {offsets = [0, 32], sizes = [8, 32], strides = [1, 1]} : vector<8x128xf32> to vector<8x32xf32>
    %cst_25 = arith.constant dense<0.000000e+00> : vector<8x32xf32>
    %77 = tpu.matmul %75, %76, %cst_25 {dimension_numbers = #tpu.dot_dimension_numbers<[1], [0], [0], [1], [0, 0, 1, 1], [], []>} : vector<8x8xf32>, vector<8x32xf32>, vector<8x32xf32> -> vector<8x32xf32>
    %78 = vector.extract_strided_slice %71 {offsets = [16, 0], sizes = [8, 8], strides = [1, 1]} : vector<32x8xf32> to vector<8x8xf32>
    %79 = vector.extract_strided_slice %31 {offsets = [0, 64], sizes = [8, 32], strides = [1, 1]} : vector<8x128xf32> to vector<8x32xf32>
    %cst_26 = arith.constant dense<0.000000e+00> : vector<8x32xf32>
    %80 = tpu.matmul %78, %79, %cst_26 {dimension_numbers = #tpu.dot_dimension_numbers<[1], [0], [0], [1], [0, 0, 1, 1], [], []>} : vector<8x8xf32>, vector<8x32xf32>, vector<8x32xf32> -> vector<8x32xf32>
    %81 = vector.extract_strided_slice %71 {offsets = [24, 0], sizes = [8, 8], strides = [1, 1]} : vector<32x8xf32> to vector<8x8xf32>
    %82 = vector.extract_strided_slice %31 {offsets = [0, 96], sizes = [8, 32], strides = [1, 1]} : vector<8x128xf32> to vector<8x32xf32>
    %cst_27 = arith.constant dense<0.000000e+00> : vector<8x32xf32>
    %83 = tpu.matmul %81, %82, %cst_27 {dimension_numbers = #tpu.dot_dimension_numbers<[1], [0], [0], [1], [0, 0, 1, 1], [], []>} : vector<8x8xf32>, vector<8x32xf32>, vector<8x32xf32> -> vector<8x32xf32>
    %84 = tpu.concatenate %74, %77, %80, %83 in 1 : vector<8x32xf32>, vector<8x32xf32>, vector<8x32xf32>, vector<8x32xf32> -> vector<8x128xf32>
    %85 = vector.broadcast %8 : vector<1x128xf32> to vector<8x128xf32>
    %86 = arith.addf %84, %85 : vector<8x128xf32>
    %87 = vector.extract_strided_slice %26 {offsets = [0, 0], sizes = [16, 8], strides = [1, 1]} : vector<32x8xf32> to vector<16x8xf32>
    %c16 = arith.constant 16 : index
    %c0_28 = arith.constant 0 : index
    %88 = vector.load %arg5[%c16, %c0_28] : memref<531x128xf32, #tpu.memory_space<vmem>>, vector<128x128xf32>
    %c1056 = arith.constant 1056 : index
    %c0_29 = arith.constant 0 : index
    %89 = vector.load %arg4[%c1056, %c0_29] : memref<1382x32xf32, #tpu.memory_space<vmem>>, vector<128x32xf32>
    %90 = vector.extract_strided_slice %89 {offsets = [0, 0], sizes = [128, 4], strides = [1, 1]} : vector<128x32xf32> to vector<128x4xf32>
    %cst_30 = arith.constant dense<0.000000e+00> : vector<8x128xf32>
    %91 = tpu.matmul %86, %88, %cst_30 {dimension_numbers = #tpu.dot_dimension_numbers<[1], [0], [0], [1], [0, 0, 1, 1], [], []>} : vector<8x128xf32>, vector<128x128xf32>, vector<8x128xf32> -> vector<8x128xf32>
    %cst_31 = arith.constant dense<0.000000e+00> : vector<8x4xf32>
    %92 = tpu.matmul %91, %90, %cst_31 {dimension_numbers = #tpu.dot_dimension_numbers<[1], [0], [0], [1], [0, 0, 1, 1], [], []>} : vector<8x128xf32>, vector<128x4xf32>, vector<8x4xf32> -> vector<8x4xf32>
    %93 = vector.extract_strided_slice %92 {offsets = [0, 0], sizes = [8, 2], strides = [1, 1]} : vector<8x4xf32> to vector<8x2xf32>
    %94 = tpu.transpose %93, [1, 0] : vector<8x2xf32> -> vector<2x8xf32>
    %95 = vector.extract_strided_slice %92 {offsets = [0, 2], sizes = [8, 2], strides = [1, 1]} : vector<8x4xf32> to vector<8x2xf32>
    %96 = vector.extract_strided_slice %95 {offsets = [0, 0], sizes = [8, 1], strides = [1, 1]} : vector<8x2xf32> to vector<8x1xf32>
    %97 = vector.extract_strided_slice %94 {offsets = [0, 0], sizes = [1, 8], strides = [1, 1]} : vector<2x8xf32> to vector<1x8xf32>
    %98 = vector.broadcast %96 : vector<8x1xf32> to vector<8x8xf32>
    %99 = vector.broadcast %97 : vector<1x8xf32> to vector<8x8xf32>
    %100 = arith.addf %98, %99 : vector<8x8xf32>
    %101 = vector.extract_strided_slice %95 {offsets = [0, 1], sizes = [8, 1], strides = [1, 1]} : vector<8x2xf32> to vector<8x1xf32>
    %102 = vector.extract_strided_slice %94 {offsets = [1, 0], sizes = [1, 8], strides = [1, 1]} : vector<2x8xf32> to vector<1x8xf32>
    %103 = vector.broadcast %101 : vector<8x1xf32> to vector<8x8xf32>
    %104 = vector.broadcast %102 : vector<1x8xf32> to vector<8x8xf32>
    %105 = arith.addf %103, %104 : vector<8x8xf32>
    %106 = tpu.concatenate %100, %105 in 0 : vector<8x8xf32>, vector<8x8xf32> -> vector<16x8xf32>
    %cst_32 = arith.constant 0.000000e+00 : f32
    %107 = vector.broadcast %cst_32 : f32 to vector<16x8xf32>
    %108 = arith.cmpf ogt, %106, %107 : vector<16x8xf32>
    %cst_33 = arith.constant 2.000000e-01 : f32
    %109 = vector.broadcast %cst_33 : f32 to vector<16x8xf32>
    %110 = arith.mulf %109, %106 : vector<16x8xf32>
    %111 = arith.select %108, %106, %110 : vector<16x8xi1>, vector<16x8xf32>
    %112 = arith.addf %111, %87 : vector<16x8xf32>
    %cst_34 = arith.constant dense<0xFF800000> : vector<16xf32>
    %113 = vector.multi_reduction <maximumf>, %112, %cst_34 [1] : vector<16x8xf32> to vector<16xf32>
    %114 = vector.shape_cast %113 : vector<16xf32> to vector<16x1xf32>
    %115 = vector.broadcast %114 : vector<16x1xf32> to vector<16x8xf32>
    %116 = arith.subf %112, %115 : vector<16x8xf32>
    %117 = math.exp %116 : vector<16x8xf32>
    %cst_35 = arith.constant dense<0.000000e+00> : vector<16xf32>
    %118 = vector.multi_reduction <add>, %117, %cst_35 [1] : vector<16x8xf32> to vector<16xf32>
    %119 = vector.shape_cast %118 : vector<16xf32> to vector<16x1xf32>
    %120 = vector.broadcast %119 : vector<16x1xf32> to vector<16x8xf32>
    %121 = arith.divf %117, %120 : vector<16x8xf32>
    %122 = vector.extract_strided_slice %121 {offsets = [0, 0], sizes = [8, 8], strides = [1, 1]} : vector<16x8xf32> to vector<8x8xf32>
    %123 = vector.extract_strided_slice %91 {offsets = [0, 0], sizes = [8, 32], strides = [1, 1]} : vector<8x128xf32> to vector<8x32xf32>
    %cst_36 = arith.constant dense<0.000000e+00> : vector<8x32xf32>
    %124 = tpu.matmul %122, %123, %cst_36 {dimension_numbers = #tpu.dot_dimension_numbers<[1], [0], [0], [1], [0, 0, 1, 1], [], []>} : vector<8x8xf32>, vector<8x32xf32>, vector<8x32xf32> -> vector<8x32xf32>
    %125 = vector.extract_strided_slice %121 {offsets = [8, 0], sizes = [8, 8], strides = [1, 1]} : vector<16x8xf32> to vector<8x8xf32>
    %126 = vector.extract_strided_slice %91 {offsets = [0, 32], sizes = [8, 32], strides = [1, 1]} : vector<8x128xf32> to vector<8x32xf32>
    %cst_37 = arith.constant dense<0.000000e+00> : vector<8x32xf32>
    %127 = tpu.matmul %125, %126, %cst_37 {dimension_numbers = #tpu.dot_dimension_numbers<[1], [0], [0], [1], [0, 0, 1, 1], [], []>} : vector<8x8xf32>, vector<8x32xf32>, vector<8x32xf32> -> vector<8x32xf32>
    %128 = tpu.concatenate %124, %127 in 1 : vector<8x32xf32>, vector<8x32xf32> -> vector<8x64xf32>
    %c1184 = arith.constant 1184 : index
    %c0_38 = arith.constant 0 : index
    %129 = vector.load %arg4[%c1184, %c0_38] : memref<1382x32xf32, #tpu.memory_space<vmem>>, vector<64x32xf32>
    %cst_39 = arith.constant dense<0.000000e+00> : vector<8x32xf32>
    %130 = tpu.matmul %128, %129, %cst_39 {dimension_numbers = #tpu.dot_dimension_numbers<[1], [0], [0], [1], [0, 0, 1, 1], [], []>} : vector<8x64xf32>, vector<64x32xf32>, vector<8x32xf32> -> vector<8x32xf32>
    %131 = vector.broadcast %4 : vector<1x32xf32> to vector<8x32xf32>
    %132 = arith.addf %130, %131 : vector<8x32xf32>
    %133 = tpu.concatenate %20, %25, %132 in 1 : vector<8x32xf32>, vector<8x32xf32>, vector<8x32xf32> -> vector<8x96xf32>
    %c1248 = arith.constant 1248 : index
    %c0_40 = arith.constant 0 : index
    %134 = vector.load %arg4[%c1248, %c0_40] : memref<1382x32xf32, #tpu.memory_space<vmem>>, vector<96x32xf32>
    %cst_41 = arith.constant dense<0.000000e+00> : vector<8x32xf32>
    %135 = tpu.matmul %133, %134, %cst_41 {dimension_numbers = #tpu.dot_dimension_numbers<[1], [0], [0], [1], [0, 0, 1, 1], [], []>} : vector<8x96xf32>, vector<96x32xf32>, vector<8x32xf32> -> vector<8x32xf32>
    %136 = vector.broadcast %5 : vector<1x32xf32> to vector<8x32xf32>
    %137 = arith.addf %135, %136 : vector<8x32xf32>
    %cst_42 = arith.constant 0.000000e+00 : f32
    %138 = vector.broadcast %cst_42 : f32 to vector<8x32xf32>
    %139 = arith.maximumf %137, %138 : vector<8x32xf32>
    %c1344 = arith.constant 1344 : index
    %c0_43 = arith.constant 0 : index
    %140 = vector.load %arg4[%c1344, %c0_43] : memref<1382x32xf32, #tpu.memory_space<vmem>>, vector<32x32xf32>
    %cst_44 = arith.constant dense<0.000000e+00> : vector<8x32xf32>
    %141 = tpu.matmul %139, %140, %cst_44 {dimension_numbers = #tpu.dot_dimension_numbers<[1], [0], [0], [1], [0, 0, 1, 1], [], []>} : vector<8x32xf32>, vector<32x32xf32>, vector<8x32xf32> -> vector<8x32xf32>
    %142 = vector.broadcast %6 : vector<1x32xf32> to vector<8x32xf32>
    %143 = arith.addf %141, %142 : vector<8x32xf32>
    %cst_45 = arith.constant dense<0xFF800000> : vector<8xf32>
    %144 = vector.multi_reduction <maximumf>, %143, %cst_45 [1] : vector<8x32xf32> to vector<8xf32>
    %145 = vector.shape_cast %144 : vector<8xf32> to vector<8x1xf32>
    %146 = vector.broadcast %145 : vector<8x1xf32> to vector<8x32xf32>
    %147 = arith.subf %143, %146 : vector<8x32xf32>
    %148 = math.exp %147 : vector<8x32xf32>
    %cst_46 = arith.constant dense<0.000000e+00> : vector<8xf32>
    %149 = vector.multi_reduction <add>, %148, %cst_46 [1] : vector<8x32xf32> to vector<8xf32>
    %150 = vector.shape_cast %149 : vector<8xf32> to vector<8x1xf32>
    %151 = vector.broadcast %150 : vector<8x1xf32> to vector<8x32xf32>
    %152 = arith.divf %148, %151 : vector<8x32xf32>
    %153 = vector.extract_strided_slice %152 {offsets = [0, 0], sizes = [8, 1], strides = [1, 1]} : vector<8x32xf32> to vector<8x1xf32>
    %154 = vector.broadcast %153 : vector<8x1xf32> to vector<8x32xf32>
    %155 = arith.mulf %154, %20 : vector<8x32xf32>
    %156 = vector.extract_strided_slice %152 {offsets = [0, 1], sizes = [8, 1], strides = [1, 1]} : vector<8x32xf32> to vector<8x1xf32>
    %157 = vector.broadcast %156 : vector<8x1xf32> to vector<8x32xf32>
    %158 = arith.mulf %157, %25 : vector<8x32xf32>
    %159 = arith.addf %155, %158 : vector<8x32xf32>
    %160 = vector.extract_strided_slice %152 {offsets = [0, 2], sizes = [8, 1], strides = [1, 1]} : vector<8x32xf32> to vector<8x1xf32>
    %161 = vector.broadcast %160 : vector<8x1xf32> to vector<8x32xf32>
    %162 = arith.mulf %161, %132 : vector<8x32xf32>
    %163 = arith.addf %159, %162 : vector<8x32xf32>
    %c0_47 = arith.constant 0 : index
    %c0_48 = arith.constant 0 : index
    %164 = vector.load %arg6[%c0_47, %c0_48] : memref<33x256xf32, #tpu.memory_space<vmem>>, vector<32x256xf32>
    %cst_49 = arith.constant dense<0.000000e+00> : vector<8x256xf32>
    %165 = tpu.matmul %163, %164, %cst_49 {dimension_numbers = #tpu.dot_dimension_numbers<[1], [0], [0], [1], [0, 0, 1, 1], [], []>} : vector<8x32xf32>, vector<32x256xf32>, vector<8x256xf32> -> vector<8x256xf32>
    %c32 = arith.constant 32 : index
    %c0_50 = arith.constant 0 : index
    %166 = vector.load %arg6[%c32, %c0_50] : memref<33x256xf32, #tpu.memory_space<vmem>>, vector<1x256xf32>
    %167 = vector.broadcast %166 : vector<1x256xf32> to vector<8x256xf32>
    %168 = arith.addf %165, %167 : vector<8x256xf32>
    %cst_51 = arith.constant 0.000000e+00 : f32
    %169 = vector.broadcast %cst_51 : f32 to vector<8x256xf32>
    %170 = arith.maximumf %168, %169 : vector<8x256xf32>
    %c144 = arith.constant 144 : index
    %c0_52 = arith.constant 0 : index
    %171 = vector.load %arg5[%c144, %c0_52] : memref<531x128xf32, #tpu.memory_space<vmem>>, vector<256x128xf32>
    %cst_53 = arith.constant dense<0.000000e+00> : vector<8x128xf32>
    %172 = tpu.matmul %170, %171, %cst_53 {dimension_numbers = #tpu.dot_dimension_numbers<[1], [0], [0], [1], [0, 0, 1, 1], [], []>} : vector<8x256xf32>, vector<256x128xf32>, vector<8x128xf32> -> vector<8x128xf32>
    %173 = vector.broadcast %9 : vector<1x128xf32> to vector<8x128xf32>
    %174 = arith.addf %172, %173 : vector<8x128xf32>
    %cst_54 = arith.constant 0.000000e+00 : f32
    %175 = vector.broadcast %cst_54 : f32 to vector<8x128xf32>
    %176 = arith.maximumf %174, %175 : vector<8x128xf32>
    %c400 = arith.constant 400 : index
    %c0_55 = arith.constant 0 : index
    %177 = vector.load %arg5[%c400, %c0_55] : memref<531x128xf32, #tpu.memory_space<vmem>>, vector<128x128xf32>
    %cst_56 = arith.constant dense<0.000000e+00> : vector<8x128xf32>
    %178 = tpu.matmul %176, %177, %cst_56 {dimension_numbers = #tpu.dot_dimension_numbers<[1], [0], [0], [1], [0, 0, 1, 1], [], []>} : vector<8x128xf32>, vector<128x128xf32>, vector<8x128xf32> -> vector<8x128xf32>
    %179 = vector.broadcast %10 : vector<1x128xf32> to vector<8x128xf32>
    %180 = arith.addf %178, %179 : vector<8x128xf32>
    %cst_57 = arith.constant dense<0xFF800000> : vector<8xf32>
    %181 = vector.multi_reduction <maximumf>, %180, %cst_57 [1] : vector<8x128xf32> to vector<8xf32>
    %182 = vector.shape_cast %181 : vector<8xf32> to vector<8x1xf32>
    %183 = vector.broadcast %182 : vector<8x1xf32> to vector<8x128xf32>
    %184 = arith.subf %180, %183 : vector<8x128xf32>
    %185 = math.exp %184 : vector<8x128xf32>
    %cst_58 = arith.constant dense<0.000000e+00> : vector<8xf32>
    %186 = vector.multi_reduction <add>, %185, %cst_58 [1] : vector<8x128xf32> to vector<8xf32>
    %187 = vector.shape_cast %186 : vector<8xf32> to vector<8x1xf32>
    %188 = vector.broadcast %187 : vector<8x1xf32> to vector<8x128xf32>
    %189 = arith.divf %185, %188 : vector<8x128xf32>
    %c0_59 = arith.constant 0 : index
    %c0_60 = arith.constant 0 : index
    %190 = vector.load %arg7[%c0_59, %c0_60] : memref<8x128xf32, #tpu.memory_space<vmem>>, vector<8x128xf32>
    tpu.vector_store %arg7[%c0_59, %c0_60], %189 {strides = array<i32>} : memref<8x128xf32, #tpu.memory_space<vmem>>, vector<8x128xf32>,
    return
  }
}

</mosaic_0001>

<llo_original>
// kernel: accident_prediction_forward.1
$region0: #{accident_prediction_forward.1}
  #allocation0 [shape = 'u32[]', space=smem, size = 0x4, offset = 0x4, fixed_abs, tag = 'smem constant byte address 0x4 - core index']
  #allocation1 [shape = 'u32[144,128]{1,0:T(1,128)}', space=vmem, size = 0x12000, scoped, tag = 'internal scratch']
  %s0 = inlined_call_operand.vmem [shape: f32[32,8], index: 0, kind: input, shape index: {}]
  %s1 = inlined_call_operand.vmem [shape: f32[8,128], index: 1, kind: input, shape index: {}]
  %s2 = inlined_call_operand.vmem [shape: f32[8,768], index: 2, kind: input, shape index: {}]
  %s3 = inlined_call_operand.vmem [shape: f32[8,16], index: 3, kind: input, shape index: {}]
  %s4 = inlined_call_operand.vmem [shape: f32[1382,32], index: 4, kind: input, shape index: {}]
  %s5 = inlined_call_operand.vmem [shape: f32[531,128], index: 5, kind: input, shape index: {}]
  %s6 = inlined_call_operand.vmem [shape: f32[33,256], index: 6, kind: input, shape index: {}]
  %s7 = inlined_call_operand.vmem [shape: f32[8,128], index: 7, kind: output, shape index: {}]
  %s8 = sld [smem:[#allocation0]]
  $region38: #{accident_prediction_forward.1} parent=0
    _
  %s10 = ssub.s32 1, %s8
  %s11 = scalar_select 0, %s10, %s8
  // Predicated region
  $region2: #{accident_prediction_forward.1} parent=0 // pred_check
    _
  $region3: #{accident_prediction_forward.1} parent=0 // pred_check_branch
    %13 = sbr.rel (0) target = $region5
  $region4: #{accident_prediction_forward.1} parent=0 // pred_region
    _
  $region5: #{accident_prediction_forward.1} parent=0 // pred_fallthru
    _
  // Predicated region
  $region6: #{accident_prediction_forward.1} parent=0 // pred_check
    _
  $region7: #{accident_prediction_forward.1} parent=0 // pred_check_branch
    %15 = sbr.rel (0) target = $region9
  $region8: #{accident_prediction_forward.1} parent=0 // pred_region
    _
  $region9: #{accident_prediction_forward.1} parent=0 // pred_fallthru
    _
  // Predicated region
  $region10: #{accident_prediction_forward.1} parent=0 // pred_check
    _
  $region11: #{accident_prediction_forward.1} parent=0 // pred_check_branch
    %17 = sbr.rel (0) target = $region13
  $region12: #{accident_prediction_forward.1} parent=0 // pred_region
    _
  $region13: #{accident_prediction_forward.1} parent=0 // pred_fallthru
    _
  // Predicated region
  $region14: #{accident_prediction_forward.1} parent=0 // pred_check
    _
  $region15: #{accident_prediction_forward.1} parent=0 // pred_check_branch
    %19 = sbr.rel (0) target = $region17
  $region16: #{accident_prediction_forward.1} parent=0 // pred_region
    _
  $region17: #{accident_prediction_forward.1} parent=0 // pred_fallthru
    _
  // Predicated region
  $region18: #{accident_prediction_forward.1} parent=0 // pred_check
    _
  $region19: #{accident_prediction_forward.1} parent=0 // pred_check_branch
    %21 = sbr.rel (0) target = $region21
  $region20: #{accident_prediction_forward.1} parent=0 // pred_region
    _
  $region21: #{accident_prediction_forward.1} parent=0 // pred_fallthru
    _
  // Predicated region
  $region22: #{accident_prediction_forward.1} parent=0 // pred_check
    _
  $region23: #{accident_prediction_forward.1} parent=0 // pred_check_branch
    %23 = sbr.rel (0) target = $region25
  $region24: #{accident_prediction_forward.1} parent=0 // pred_region
    _
  $region25: #{accident_prediction_forward.1} parent=0 // pred_fallthru
    _
  // Predicated region
  $region26: #{accident_prediction_forward.1} parent=0 // pred_check
    _
  $region27: #{accident_prediction_forward.1} parent=0 // pred_check_branch
    %25 = sbr.rel (0) target = $region29
  $region28: #{accident_prediction_forward.1} parent=0 // pred_region
    _
  $region29: #{accident_prediction_forward.1} parent=0 // pred_fallthru
    _
  %v26 = vld [vmem:[%s4 + $0x560] sm:$0x3f]
  %v27 = vld [vmem:[%s5 + $0x210] sm:$0x7]
  %v28 = vld [vmem:[%s1] sm:$0xff]
  %v29 = vld [vmem:[%s4] sm:$0xff]
  %v30 = vld [vmem:[%s4 + $0x8] sm:$0xff]
  %v31 = vld [vmem:[%s4 + $0x10] sm:$0xff]
  %v32 = vld [vmem:[%s4 + $0x18] sm:$0xff]
  %v33 = vld [vmem:[%s4 + $0x20] sm:$0xff]
  %v34 = vld [vmem:[%s4 + $0x28] sm:$0xff]
  %v35 = vld [vmem:[%s4 + $0x30] sm:$0xff]
  %v36 = vld [vmem:[%s4 + $0x38] sm:$0xff]
  %v37 = vld [vmem:[%s4 + $0x40] sm:$0xff]
  %v38 = vld [vmem:[%s4 + $0x48] sm:$0xff]
  %v39 = vld [vmem:[%s4 + $0x50] sm:$0xff]
  %v40 = vld [vmem:[%s4 + $0x58] sm:$0xff]
  %v41 = vld [vmem:[%s4 + $0x60] sm:$0xff]
  %v42 = vld [vmem:[%s4 + $0x68] sm:$0xff]
  %v43 = vld [vmem:[%s4 + $0x70] sm:$0xff]
  %v44 = vld [vmem:[%s4 + $0x78] sm:$0xff]
  %v45 = vlaneseq
  %v46 = vshrl.u32 %v45, 7
  %v47 = vsub.s32 0, %v46
  %v48 = vrot.slane %v26, %v47
  %49 = vmatprep.subr.mxu0 0.0
  %50 = vmatpush1.msra.mxu0 %v29
  %51 = vmatprep.subr.mxu0 0.0
  %52 = vmatpush1.msra.mxu0 %v30
  %53 = vmatprep.subr.mxu0 0.0
  %54 = vmatpush1.msra.mxu0 %v31
  %55 = vmatprep.subr.mxu0 0.0
  %56 = vmatpush1.msra.mxu0 %v32
  %57 = vmatprep.subr.mxu0 0.0
  %58 = vmatpush1.msra.mxu0 %v33
  %59 = vmatprep.subr.mxu0 0.0
  %60 = vmatpush1.msra.mxu0 %v34
  %61 = vmatprep.subr.mxu0 0.0
  %62 = vmatpush1.msra.mxu0 %v35
  %63 = vmatprep.subr.mxu0 0.0
  %64 = vmatpush1.msra.mxu0 %v36
  %65 = vmatprep.subr.mxu0 0.0
  %66 = vmatpush1.msra.mxu0 %v37
  %67 = vmatprep.subr.mxu0 0.0
  %68 = vmatpush1.msra.mxu0 %v38
  %69 = vmatprep.subr.mxu0 0.0
  %70 = vmatpush1.msra.mxu0 %v39
  %71 = vmatprep.subr.mxu0 0.0
  %72 = vmatpush1.msra.mxu0 %v40
  %73 = vmatprep.subr.mxu0 0.0
  %74 = vmatpush1.msra.mxu0 %v41
  %75 = vmatprep.subr.mxu0 0.0
  %76 = vmatpush1.msra.mxu0 %v42
  %77 = vmatprep.subr.mxu0 0.0
  %78 = vmatpush1.msra.mxu0 %v43
  %79 = vmatprep.subr.mxu0 0.0
  %80 = vmatpush1.msra.mxu0 %v44
  %81 = vmatprep.subr.mxu0 0.0
  %82 = vmatpush1.msra.mxu0 0.0
  %83 = vmatprep.subr.mxu0 0.0
  %84 = vmatpush1.msra.mxu0 0.0
  %85 = vmatprep.subr.mxu0 0.0
  %86 = vmatpush1.msra.mxu0 0.0
  %87 = vmatprep.subr.mxu0 0.0
  %88 = vmatpush1.msra.mxu0 0.0
  %89 = vmatprep.subr.mxu0 0.0
  %90 = vmatpush1.msra.mxu0 0.0
  %91 = vmatprep.subr.mxu0 0.0
  %92 = vmatpush1.msra.mxu0 0.0
  %93 = vmatprep.subr.mxu0 0.0
  %94 = vmatpush1.msra.mxu0 0.0
  %95 = vmatprep.subr.mxu0 0.0
  %96 = vmatpush1.msra.mxu0 0.0
  %97 = vmatprep.subr.mxu0 0.0
  %98 = vmatpush1.msra.mxu0 0.0
  %99 = vmatprep.subr.mxu0 0.0
  %100 = vmatpush1.msra.mxu0 0.0
  %101 = vmatprep.subr.mxu0 0.0
  %102 = vmatpush1.msra.mxu0 0.0
  %103 = vmatprep.subr.mxu0 0.0
  %104 = vmatpush1.msra.mxu0 0.0
  %105 = vmatprep.subr.mxu0 0.0
  %106 = vmatpush1.msra.mxu0 0.0
  %107 = vmatprep.subr.mxu0 0.0
  %108 = vmatpush1.msra.mxu0 0.0
  %109 = vmatprep.subr.mxu0 0.0
  %110 = vmatpush1.msra.mxu0 0.0
  %111 = vmatprep.subr.mxu0 0.0
  %112 = vmatpush1.msra.mxu0 0.0
  %113 = vmatprep.mubr.f32.mxu0 0.0
  %114 = vmatmul.mubr.f32.gmra.mrb[0].mxu0 %v28
  %v115 = vpop.f32.mrb[0].mxu0
  %v116 = vadd.f32 %v48, %v115
  %v117 = vpop.f32.mrb[0].mxu0
  %118 = vdwg.mxu0
  %v119 = vtanh.pop %v116
  %v120 = vld [vmem:[%s4 + $0x80] sm:$0xff]
  %v121 = vld [vmem:[%s4 + $0x88] sm:$0xff]
  %v122 = vld [vmem:[%s4 + $0x90] sm:$0xff]
  %v123 = vld [vmem:[%s4 + $0x98] sm:$0xff]
  %v124 = vlaneseq
  %v125 = vshrl.u32 %v124, 7
  %v126 = vsub.s32 1, %v125
  %v127 = vrot.slane %v26, %v126
  %vm128 = vcmask 261120
  %v130 = vsel %vm128, %v119, 0
  %132 = vmatprep.subr.mxu0 0.0
  %133 = vmatpush1.msra.mxu0 %v120
  %134 = vmatprep.subr.mxu0 0.0
  %135 = vmatpush1.msra.mxu0 %v121
  %136 = vmatprep.subr.mxu0 0.0
  %137 = vmatpush1.msra.mxu0 %v122
  %138 = vmatprep.subr.mxu0 0.0
  %139 = vmatpush1.msra.mxu0 %v123
  %140 = vmatprep.subr.mxu0 0.0
  %141 = vmatpush1.msra.mxu0 0.0
  %142 = vmatprep.subr.mxu0 0.0
  %143 = vmatpush1.msra.mxu0 0.0
  %144 = vmatprep.subr.mxu0 0.0
  %145 = vmatpush1.msra.mxu0 0.0
  %146 = vmatprep.subr.mxu0 0.0
  %147 = vmatpush1.msra.mxu0 0.0
  %148 = vmatprep.subr.mxu0 0.0
  %149 = vmatpush1.msra.mxu0 0.0
  %150 = vmatprep.subr.mxu0 0.0
  %151 = vmatpush1.msra.mxu0 0.0
  %152 = vmatprep.subr.mxu0 0.0
  %153 = vmatpush1.msra.mxu0 0.0
  %154 = vmatprep.subr.mxu0 0.0
  %155 = vmatpush1.msra.mxu0 0.0
  %156 = vmatprep.subr.mxu0 0.0
  %157 = vmatpush1.msra.mxu0 0.0
  %158 = vmatprep.subr.mxu0 0.0
  %159 = vmatpush1.msra.mxu0 0.0
  %160 = vmatprep.subr.mxu0 0.0
  %161 = vmatpush1.msra.mxu0 0.0
  %162 = vmatprep.subr.mxu0 0.0
  %163 = vmatpush1.msra.mxu0 0.0
  %164 = vmatprep.subr.mxu0 0.0
  %165 = vmatpush1.msra.mxu0 0.0
  %166 = vmatprep.subr.mxu0 0.0
  %167 = vmatpush1.msra.mxu0 0.0
  %168 = vmatprep.subr.mxu0 0.0
  %169 = vmatpush1.msra.mxu0 0.0
  %170 = vmatprep.subr.mxu0 0.0
  %171 = vmatpush1.msra.mxu0 0.0
  %172 = vmatprep.subr.mxu0 0.0
  %173 = vmatpush1.msra.mxu0 0.0
  %174 = vmatprep.subr.mxu0 0.0
  %175 = vmatpush1.msra.mxu0 0.0
  %176 = vmatprep.subr.mxu0 0.0
  %177 = vmatpush1.msra.mxu0 0.0
  %178 = vmatprep.subr.mxu0 0.0
  %179 = vmatpush1.msra.mxu0 0.0
  %180 = vmatprep.subr.mxu0 0.0
  %181 = vmatpush1.msra.mxu0 0.0
  %182 = vmatprep.subr.mxu0 0.0
  %183 = vmatpush1.msra.mxu0 0.0
  %184 = vmatprep.subr.mxu0 0.0
  %185 = vmatpush1.msra.mxu0 0.0
  %186 = vmatprep.subr.mxu0 0.0
  %187 = vmatpush1.msra.mxu0 0.0
  %188 = vmatprep.subr.mxu0 0.0
  %189 = vmatpush1.msra.mxu0 0.0
  %190 = vmatprep.subr.mxu0 0.0
  %191 = vmatpush1.msra.mxu0 0.0
  %192 = vmatprep.subr.mxu0 0.0
  %193 = vmatpush1.msra.mxu0 0.0
  %194 = vmatprep.subr.mxu0 0.0
  %195 = vmatpush1.msra.mxu0 0.0
  %196 = vmatprep.mubr.f32.mxu0 0.0
  %197 = vmatmul.mubr.f32.gmra.mrb[0].mxu0 %v130
  %v198 = vpop.f32.mrb[0].mxu0
  %v199 = vadd.f32 %v127, %v198
  %v200 = vpop.f32.mrb[0].mxu0
  %201 = vdwg.mxu0
  %v202 = vld [vmem:[%s2] sm:$0xff]
  %v203 = vld [vmem:[%s2 + $0x8] sm:$0xff]
  %v204 = vld [vmem:[%s2 + $0x10] sm:$0xff]
  %v205 = vld [vmem:[%s2 + $0x18] sm:$0xff]
  %v206 = vld [vmem:[%s2 + $0x20] sm:$0xff]
  %v207 = vld [vmem:[%s2 + $0x28] sm:$0xff]
  %v208 = vld [vmem:[%s4 + $0xa0] sm:$0xff]
  %v209 = vld [vmem:[%s4 + $0xa8] sm:$0xff]
  %v210 = vld [vmem:[%s4 + $0xb0] sm:$0xff]
  %v211 = vld [vmem:[%s4 + $0xb8] sm:$0xff]
  %v212 = vld [vmem:[%s4 + $0xc0] sm:$0xff]
  %v213 = vld [vmem:[%s4 + $0xc8] sm:$0xff]
  %v214 = vld [vmem:[%s4 + $0xd0] sm:$0xff]
  %v215 = vld [vmem:[%s4 + $0xd8] sm:$0xff]
  %v216 = vld [vmem:[%s4 + $0xe0] sm:$0xff]
  %v217 = vld [vmem:[%s4 + $0xe8] sm:$0xff]
  %v218 = vld [vmem:[%s4 + $0xf0] sm:$0xff]
  %v219 = vld [vmem:[%s4 + $0xf8] sm:$0xff]
  %v220 = vld [vmem:[%s4 + $0x100] sm:$0xff]
  %v221 = vld [vmem:[%s4 + $0x108] sm:$0xff]
  %v222 = vld [vmem:[%s4 + $0x110] sm:$0xff]
  %v223 = vld [vmem:[%s4 + $0x118] sm:$0xff]
  %v224 = vld [vmem:[%s4 + $0x120] sm:$0xff]
  %v225 = vld [vmem:[%s4 + $0x128] sm:$0xff]
  %v226 = vld [vmem:[%s4 + $0x130] sm:$0xff]
  %v227 = vld [vmem:[%s4 + $0x138] sm:$0xff]
  %v228 = vld [vmem:[%s4 + $0x140] sm:$0xff]
  %v229 = vld [vmem:[%s4 + $0x148] sm:$0xff]
  %v230 = vld [vmem:[%s4 + $0x150] sm:$0xff]
  %v231 = vld [vmem:[%s4 + $0x158] sm:$0xff]
  %v232 = vld [vmem:[%s4 + $0x160] sm:$0xff]
  %v233 = vld [vmem:[%s4 + $0x168] sm:$0xff]
  %v234 = vld [vmem:[%s4 + $0x170] sm:$0xff]
  %v235 = vld [vmem:[%s4 + $0x178] sm:$0xff]
  %v236 = vld [vmem:[%s4 + $0x180] sm:$0xff]
  %v237 = vld [vmem:[%s4 + $0x188] sm:$0xff]
  %v238 = vld [vmem:[%s4 + $0x190] sm:$0xff]
  %v239 = vld [vmem:[%s4 + $0x198] sm:$0xff]
  %v240 = vld [vmem:[%s4 + $0x1a0] sm:$0xff]
  %v241 = vld [vmem:[%s4 + $0x1a8] sm:$0xff]
  %v242 = vld [vmem:[%s4 + $0x1b0] sm:$0xff]
  %v243 = vld [vmem:[%s4 + $0x1b8] sm:$0xff]
  %v244 = vld [vmem:[%s4 + $0x1c0] sm:$0xff]
  %v245 = vld [vmem:[%s4 + $0x1c8] sm:$0xff]
  %v246 = vld [vmem:[%s4 + $0x1d0] sm:$0xff]
  %v247 = vld [vmem:[%s4 + $0x1d8] sm:$0xff]
  %v248 = vld [vmem:[%s4 + $0x1e0] sm:$0xff]
  %v249 = vld [vmem:[%s4 + $0x1e8] sm:$0xff]
  %v250 = vld [vmem:[%s4 + $0x1f0] sm:$0xff]
  %v251 = vld [vmem:[%s4 + $0x1f8] sm:$0xff]
  %v252 = vld [vmem:[%s4 + $0x200] sm:$0xff]
  %v253 = vld [vmem:[%s4 + $0x208] sm:$0xff]
  %v254 = vld [vmem:[%s4 + $0x210] sm:$0xff]
  %v255 = vld [vmem:[%s4 + $0x218] sm:$0xff]
  %v256 = vld [vmem:[%s4 + $0x220] sm:$0xff]
  %v257 = vld [vmem:[%s4 + $0x228] sm:$0xff]
  %v258 = vld [vmem:[%s4 + $0x230] sm:$0xff]
  %v259 = vld [vmem:[%s4 + $0x238] sm:$0xff]
  %v260 = vld [vmem:[%s4 + $0x240] sm:$0xff]
  %v261 = vld [vmem:[%s4 + $0x248] sm:$0xff]
  %v262 = vld [vmem:[%s4 + $0x250] sm:$0xff]
  %v263 = vld [vmem:[%s4 + $0x258] sm:$0xff]
  %v264 = vld [vmem:[%s4 + $0x260] sm:$0xff]
  %v265 = vld [vmem:[%s4 + $0x268] sm:$0xff]
  %v266 = vld [vmem:[%s4 + $0x270] sm:$0xff]
  %v267 = vld [vmem:[%s4 + $0x278] sm:$0xff]
  %v268 = vld [vmem:[%s4 + $0x280] sm:$0xff]
  %v269 = vld [vmem:[%s4 + $0x288] sm:$0xff]
  %v270 = vld [vmem:[%s4 + $0x290] sm:$0xff]
  %v271 = vld [vmem:[%s4 + $0x298] sm:$0xff]
  %v272 = vld [vmem:[%s4 + $0x2a0] sm:$0xff]
  %v273 = vld [vmem:[%s4 + $0x2a8] sm:$0xff]
  %v274 = vld [vmem:[%s4 + $0x2b0] sm:$0xff]
  %v275 = vld [vmem:[%s4 + $0x2b8] sm:$0xff]
  %v276 = vld [vmem:[%s4 + $0x2c0] sm:$0xff]
  %v277 = vld [vmem:[%s4 + $0x2c8] sm:$0xff]
  %v278 = vld [vmem:[%s4 + $0x2d0] sm:$0xff]
  %v279 = vld [vmem:[%s4 + $0x2d8] sm:$0xff]
  %v280 = vld [vmem:[%s4 + $0x2e0] sm:$0xff]
  %v281 = vld [vmem:[%s4 + $0x2e8] sm:$0xff]
  %v282 = vld [vmem:[%s4 + $0x2f0] sm:$0xff]
  %v283 = vld [vmem:[%s4 + $0x2f8] sm:$0xff]
  %v284 = vld [vmem:[%s4 + $0x300] sm:$0xff]
  %v285 = vld [vmem:[%s4 + $0x308] sm:$0xff]
  %v286 = vld [vmem:[%s4 + $0x310] sm:$0xff]
  %v287 = vld [vmem:[%s4 + $0x318] sm:$0xff]
  %v288 = vld [vmem:[%s4 + $0x320] sm:$0xff]
  %v289 = vld [vmem:[%s4 + $0x328] sm:$0xff]
  %v290 = vld [vmem:[%s4 + $0x330] sm:$0xff]
  %v291 = vld [vmem:[%s4 + $0x338] sm:$0xff]
  %v292 = vld [vmem:[%s4 + $0x340] sm:$0xff]
  %v293 = vld [vmem:[%s4 + $0x348] sm:$0xff]
  %v294 = vld [vmem:[%s4 + $0x350] sm:$0xff]
  %v295 = vld [vmem:[%s4 + $0x358] sm:$0xff]
  %v296 = vld [vmem:[%s4 + $0x360] sm:$0xff]
  %v297 = vld [vmem:[%s4 + $0x368] sm:$0xff]
  %v298 = vld [vmem:[%s4 + $0x370] sm:$0xff]
  %v299 = vld [vmem:[%s4 + $0x378] sm:$0xff]
  %v300 = vld [vmem:[%s4 + $0x380] sm:$0xff]
  %v301 = vld [vmem:[%s4 + $0x388] sm:$0xff]
  %v302 = vld [vmem:[%s4 + $0x390] sm:$0xff]
  %v303 = vld [vmem:[%s4 + $0x398] sm:$0xff]
  %v304 = vlaneseq
  %v305 = vshrl.u32 %v304, 7
  %v306 = vsub.s32 2, %v305
  %v307 = vrot.slane %v26, %v306
  %308 = vmatprep.subr.mxu0 0.0
  %309 = vmatpush1.msra.mxu0 %v208
  %310 = vmatprep.subr.mxu0 0.0
  %311 = vmatpush1.msra.mxu0 %v209
  %312 = vmatprep.subr.mxu0 0.0
  %313 = vmatpush1.msra.mxu0 %v210
  %314 = vmatprep.subr.mxu0 0.0
  %315 = vmatpush1.msra.mxu0 %v211
  %316 = vmatprep.subr.mxu0 0.0
  %317 = vmatpush1.msra.mxu0 %v212
  %318 = vmatprep.subr.mxu0 0.0
  %319 = vmatpush1.msra.mxu0 %v213
  %320 = vmatprep.subr.mxu0 0.0
  %321 = vmatpush1.msra.mxu0 %v214
  %322 = vmatprep.subr.mxu0 0.0
  %323 = vmatpush1.msra.mxu0 %v215
  %324 = vmatprep.subr.mxu0 0.0
  %325 = vmatpush1.msra.mxu0 %v216
  %326 = vmatprep.subr.mxu0 0.0
  %327 = vmatpush1.msra.mxu0 %v217
  %328 = vmatprep.subr.mxu0 0.0
  %329 = vmatpush1.msra.mxu0 %v218
  %330 = vmatprep.subr.mxu0 0.0
  %331 = vmatpush1.msra.mxu0 %v219
  %332 = vmatprep.subr.mxu0 0.0
  %333 = vmatpush1.msra.mxu0 %v220
  %334 = vmatprep.subr.mxu0 0.0
  %335 = vmatpush1.msra.mxu0 %v221
  %336 = vmatprep.subr.mxu0 0.0
  %337 = vmatpush1.msra.mxu0 %v222
  %338 = vmatprep.subr.mxu0 0.0
  %339 = vmatpush1.msra.mxu0 %v223
  %340 = vmatprep.subr.mxu0 0.0
  %341 = vmatpush1.msra.mxu0 %v224
  %342 = vmatprep.subr.mxu0 0.0
  %343 = vmatpush1.msra.mxu0 %v225
  %344 = vmatprep.subr.mxu0 0.0
  %345 = vmatpush1.msra.mxu0 %v226
  %346 = vmatprep.subr.mxu0 0.0
  %347 = vmatpush1.msra.mxu0 %v227
  %348 = vmatprep.subr.mxu0 0.0
  %349 = vmatpush1.msra.mxu0 %v228
  %350 = vmatprep.subr.mxu0 0.0
  %351 = vmatpush1.msra.mxu0 %v229
  %352 = vmatprep.subr.mxu0 0.0
  %353 = vmatpush1.msra.mxu0 %v230
  %354 = vmatprep.subr.mxu0 0.0
  %355 = vmatpush1.msra.mxu0 %v231
  %356 = vmatprep.subr.mxu0 0.0
  %357 = vmatpush1.msra.mxu0 %v232
  %358 = vmatprep.subr.mxu0 0.0
  %359 = vmatpush1.msra.mxu0 %v233
  %360 = vmatprep.subr.mxu0 0.0
  %361 = vmatpush1.msra.mxu0 %v234
  %362 = vmatprep.subr.mxu0 0.0
  %363 = vmatpush1.msra.mxu0 %v235
  %364 = vmatprep.subr.mxu0 0.0
  %365 = vmatpush1.msra.mxu0 %v236
  %366 = vmatprep.subr.mxu0 0.0
  %367 = vmatpush1.msra.mxu0 %v237
  %368 = vmatprep.subr.mxu0 0.0
  %369 = vmatpush1.msra.mxu0 %v238
  %370 = vmatprep.subr.mxu0 0.0
  %371 = vmatpush1.msra.mxu0 %v239
  %372 = vmatprep.mubr.f32.mxu0 %v203
  %373 = vmatmul.mubr.f32.gmra.mrb[0].mxu0 %v202
  %v374 = vpop.f32.mrb[0].mxu0
  %v375 = vadd.f32 %v307, %v374
  %v376 = vpop.f32.mrb[0].mxu0
  %377 = vdwg.mxu0
  %378 = vmatprep.subr.mxu0 0.0
  %379 = vmatpush1.msra.mxu0 %v240
  %380 = vmatprep.subr.mxu0 0.0
  %381 = vmatpush1.msra.mxu0 %v241
  %382 = vmatprep.subr.mxu0 0.0
  %383 = vmatpush1.msra.mxu0 %v242
  %384 = vmatprep.subr.mxu0 0.0
  %385 = vmatpush1.msra.mxu0 %v243
  %386 = vmatprep.subr.mxu0 0.0
  %387 = vmatpush1.msra.mxu0 %v244
  %388 = vmatprep.subr.mxu0 0.0
  %389 = vmatpush1.msra.mxu0 %v245
  %390 = vmatprep.subr.mxu0 0.0
  %391 = vmatpush1.msra.mxu0 %v246
  %392 = vmatprep.subr.mxu0 0.0
  %393 = vmatpush1.msra.mxu0 %v247
  %394 = vmatprep.subr.mxu0 0.0
  %395 = vmatpush1.msra.mxu0 %v248
  %396 = vmatprep.subr.mxu0 0.0
  %397 = vmatpush1.msra.mxu0 %v249
  %398 = vmatprep.subr.mxu0 0.0
  %399 = vmatpush1.msra.mxu0 %v250
  %400 = vmatprep.subr.mxu0 0.0
  %401 = vmatpush1.msra.mxu0 %v251
  %402 = vmatprep.subr.mxu0 0.0
  %403 = vmatpush1.msra.mxu0 %v252
  %404 = vmatprep.subr.mxu0 0.0
  %405 = vmatpush1.msra.mxu0 %v253
  %406 = vmatprep.subr.mxu0 0.0
  %407 = vmatpush1.msra.mxu0 %v254
  %408 = vmatprep.subr.mxu0 0.0
  %409 = vmatpush1.msra.mxu0 %v255
  %410 = vmatprep.subr.mxu0 0.0
  %411 = vmatpush1.msra.mxu0 %v256
  %412 = vmatprep.subr.mxu0 0.0
  %413 = vmatpush1.msra.mxu0 %v257
  %414 = vmatprep.subr.mxu0 0.0
  %415 = vmatpush1.msra.mxu0 %v258
  %416 = vmatprep.subr.mxu0 0.0
  %417 = vmatpush1.msra.mxu0 %v259
  %418 = vmatprep.subr.mxu0 0.0
  %419 = vmatpush1.msra.mxu0 %v260
  %420 = vmatprep.subr.mxu0 0.0
  %421 = vmatpush1.msra.mxu0 %v261
  %422 = vmatprep.subr.mxu0 0.0
  %423 = vmatpush1.msra.mxu0 %v262
  %424 = vmatprep.subr.mxu0 0.0
  %425 = vmatpush1.msra.mxu0 %v263
  %426 = vmatprep.subr.mxu0 0.0
  %427 = vmatpush1.msra.mxu0 %v264
  %428 = vmatprep.subr.mxu0 0.0
  %429 = vmatpush1.msra.mxu0 %v265
  %430 = vmatprep.subr.mxu0 0.0
  %431 = vmatpush1.msra.mxu0 %v266
  %432 = vmatprep.subr.mxu0 0.0
  %433 = vmatpush1.msra.mxu0 %v267
  %434 = vmatprep.subr.mxu0 0.0
  %435 = vmatpush1.msra.mxu0 %v268
  %436 = vmatprep.subr.mxu0 0.0
  %437 = vmatpush1.msra.mxu0 %v269
  %438 = vmatprep.subr.mxu0 0.0
  %439 = vmatpush1.msra.mxu0 %v270
  %440 = vmatprep.subr.mxu0 0.0
  %441 = vmatpush1.msra.mxu0 %v271
  %442 = vmatprep.mubr.f32.mxu0 %v205
  %443 = vmatmul.mubr.f32.gmra.mrb[0].mxu0 %v204
  %v444 = vpop.f32.mrb[0].mxu0
  %v445 = vadd.f32 %v375, %v444
  %v446 = vpop.f32.mrb[0].mxu0
  %447 = vdwg.mxu0
  %448 = vmatprep.subr.mxu0 0.0
  %449 = vmatpush1.msra.mxu0 %v272
  %450 = vmatprep.subr.mxu0 0.0
  %451 = vmatpush1.msra.mxu0 %v273
  %452 = vmatprep.subr.mxu0 0.0
  %453 = vmatpush1.msra.mxu0 %v274
  %454 = vmatprep.subr.mxu0 0.0
  %455 = vmatpush1.msra.mxu0 %v275
  %456 = vmatprep.subr.mxu0 0.0
  %457 = vmatpush1.msra.mxu0 %v276
  %458 = vmatprep.subr.mxu0 0.0
  %459 = vmatpush1.msra.mxu0 %v277
  %460 = vmatprep.subr.mxu0 0.0
  %461 = vmatpush1.msra.mxu0 %v278
  %462 = vmatprep.subr.mxu0 0.0
  %463 = vmatpush1.msra.mxu0 %v279
  %464 = vmatprep.subr.mxu0 0.0
  %465 = vmatpush1.msra.mxu0 %v280
  %466 = vmatprep.subr.mxu0 0.0
  %467 = vmatpush1.msra.mxu0 %v281
  %468 = vmatprep.subr.mxu0 0.0
  %469 = vmatpush1.msra.mxu0 %v282
  %470 = vmatprep.subr.mxu0 0.0
  %471 = vmatpush1.msra.mxu0 %v283
  %472 = vmatprep.subr.mxu0 0.0
  %473 = vmatpush1.msra.mxu0 %v284
  %474 = vmatprep.subr.mxu0 0.0
  %475 = vmatpush1.msra.mxu0 %v285
  %476 = vmatprep.subr.mxu0 0.0
  %477 = vmatpush1.msra.mxu0 %v286
  %478 = vmatprep.subr.mxu0 0.0
  %479 = vmatpush1.msra.mxu0 %v287
  %480 = vmatprep.subr.mxu0 0.0
  %481 = vmatpush1.msra.mxu0 %v288
  %482 = vmatprep.subr.mxu0 0.0
  %483 = vmatpush1.msra.mxu0 %v289
  %484 = vmatprep.subr.mxu0 0.0
  %485 = vmatpush1.msra.mxu0 %v290
  %486 = vmatprep.subr.mxu0 0.0
  %487 = vmatpush1.msra.mxu0 %v291
  %488 = vmatprep.subr.mxu0 0.0
  %489 = vmatpush1.msra.mxu0 %v292
  %490 = vmatprep.subr.mxu0 0.0
  %491 = vmatpush1.msra.mxu0 %v293
  %492 = vmatprep.subr.mxu0 0.0
  %493 = vmatpush1.msra.mxu0 %v294
  %494 = vmatprep.subr.mxu0 0.0
  %495 = vmatpush1.msra.mxu0 %v295
  %496 = vmatprep.subr.mxu0 0.0
  %497 = vmatpush1.msra.mxu0 %v296
  %498 = vmatprep.subr.mxu0 0.0
  %499 = vmatpush1.msra.mxu0 %v297
  %500 = vmatprep.subr.mxu0 0.0
  %501 = vmatpush1.msra.mxu0 %v298
  %502 = vmatprep.subr.mxu0 0.0
  %503 = vmatpush1.msra.mxu0 %v299
  %504 = vmatprep.subr.mxu0 0.0
  %505 = vmatpush1.msra.mxu0 %v300
  %506 = vmatprep.subr.mxu0 0.0
  %507 = vmatpush1.msra.mxu0 %v301
  %508 = vmatprep.subr.mxu0 0.0
  %509 = vmatpush1.msra.mxu0 %v302
  %510 = vmatprep.subr.mxu0 0.0
  %511 = vmatpush1.msra.mxu0 %v303
  %512 = vmatprep.mubr.f32.mxu0 %v207
  %513 = vmatmul.mubr.f32.gmra.mrb[0].mxu0 %v206
  %v514 = vpop.f32.mrb[0].mxu0
  %v515 = vadd.f32 %v445, %v514
  %v516 = vpop.f32.mrb[0].mxu0
  %517 = vdwg.mxu0
  %v518 = vld [vmem:[%s0] sm:$0xff]
  %v519 = vld [vmem:[%s0 + $0x8] sm:$0xff]
  %v520 = vld [vmem:[%s0 + $0x10] sm:$0xff]
  %v521 = vld [vmem:[%s0 + $0x18] sm:$0xff]
  %v522 = vld [vmem:[%s3] sm:$0xff]
  %v523 = vld [vmem:[%s5] sm:$0xff]
  %v524 = vld [vmem:[%s5 + $0x8] sm:$0xff]
  %v525 = vld [vmem:[%s4 + $0x3a0] sm:$0xff]
  %v526 = vld [vmem:[%s4 + $0x3a8] sm:$0xff]
  %v527 = vld [vmem:[%s4 + $0x3b0] sm:$0xff]
  %v528 = vld [vmem:[%s4 + $0x3b8] sm:$0xff]
  %v529 = vld [vmem:[%s4 + $0x3c0] sm:$0xff]
  %v530 = vld [vmem:[%s4 + $0x3c8] sm:$0xff]
  %v531 = vld [vmem:[%s4 + $0x3d0] sm:$0xff]
  %v532 = vld [vmem:[%s4 + $0x3d8] sm:$0xff]
  %v533 = vld [vmem:[%s4 + $0x3e0] sm:$0xff]
  %v534 = vld [vmem:[%s4 + $0x3e8] sm:$0xff]
  %v535 = vld [vmem:[%s4 + $0x3f0] sm:$0xff]
  %v536 = vld [vmem:[%s4 + $0x3f8] sm:$0xff]
  %v537 = vld [vmem:[%s4 + $0x400] sm:$0xff]
  %v538 = vld [vmem:[%s4 + $0x408] sm:$0xff]
  %v539 = vld [vmem:[%s4 + $0x410] sm:$0xff]
  %v540 = vld [vmem:[%s4 + $0x418] sm:$0xff]
  %vm541 = vcmask 130048
  %v543 = vsel %vm541, %v522, 0
  %545 = vmatprep.subr.mxu0 0.0
  %546 = vmatpush1.msra.mxu0 %v523
  %547 = vmatprep.subr.mxu0 0.0
  %548 = vmatpush1.msra.mxu0 %v524
  %549 = vmatprep.subr.mxu0 0.0
  %550 = vmatpush1.msra.mxu0 0.0
  %551 = vmatprep.subr.mxu0 0.0
  %552 = vmatpush1.msra.mxu0 0.0
  %553 = vmatprep.subr.mxu0 0.0
  %554 = vmatpush1.msra.mxu0 0.0
  %555 = vmatprep.subr.mxu0 0.0
  %556 = vmatpush1.msra.mxu0 0.0
  %557 = vmatprep.subr.mxu0 0.0
  %558 = vmatpush1.msra.mxu0 0.0
  %559 = vmatprep.subr.mxu0 0.0
  %560 = vmatpush1.msra.mxu0 0.0
  %561 = vmatprep.subr.mxu0 0.0
  %562 = vmatpush1.msra.mxu0 0.0
  %563 = vmatprep.subr.mxu0 0.0
  %564 = vmatpush1.msra.mxu0 0.0
  %565 = vmatprep.subr.mxu0 0.0
  %566 = vmatpush1.msra.mxu0 0.0
  %567 = vmatprep.subr.mxu0 0.0
  %568 = vmatpush1.msra.mxu0 0.0
  %569 = vmatprep.subr.mxu0 0.0
  %570 = vmatpush1.msra.mxu0 0.0
  %571 = vmatprep.subr.mxu0 0.0
  %572 = vmatpush1.msra.mxu0 0.0
  %573 = vmatprep.subr.mxu0 0.0
  %574 = vmatpush1.msra.mxu0 0.0
  %575 = vmatprep.subr.mxu0 0.0
  %576 = vmatpush1.msra.mxu0 0.0
  %577 = vmatprep.subr.mxu0 0.0
  %578 = vmatpush1.msra.mxu0 0.0
  %579 = vmatprep.subr.mxu0 0.0
  %580 = vmatpush1.msra.mxu0 0.0
  %581 = vmatprep.subr.mxu0 0.0
  %582 = vmatpush1.msra.mxu0 0.0
  %583 = vmatprep.subr.mxu0 0.0
  %584 = vmatpush1.msra.mxu0 0.0
  %585 = vmatprep.subr.mxu0 0.0
  %586 = vmatpush1.msra.mxu0 0.0
  %587 = vmatprep.subr.mxu0 0.0
  %588 = vmatpush1.msra.mxu0 0.0
  %589 = vmatprep.subr.mxu0 0.0
  %590 = vmatpush1.msra.mxu0 0.0
  %591 = vmatprep.subr.mxu0 0.0
  %592 = vmatpush1.msra.mxu0 0.0
  %593 = vmatprep.subr.mxu0 0.0
  %594 = vmatpush1.msra.mxu0 0.0
  %595 = vmatprep.subr.mxu0 0.0
  %596 = vmatpush1.msra.mxu0 0.0
  %597 = vmatprep.subr.mxu0 0.0
  %598 = vmatpush1.msra.mxu0 0.0
  %599 = vmatprep.subr.mxu0 0.0
  %600 = vmatpush1.msra.mxu0 0.0
  %601 = vmatprep.subr.mxu0 0.0
  %602 = vmatpush1.msra.mxu0 0.0
  %603 = vmatprep.subr.mxu0 0.0
  %604 = vmatpush1.msra.mxu0 0.0
  %605 = vmatprep.subr.mxu0 0.0
  %606 = vmatpush1.msra.mxu0 0.0
  %607 = vmatprep.subr.mxu0 0.0
  %608 = vmatpush1.msra.mxu0 0.0
  %609 = vmatprep.mubr.f32.mxu0 0.0
  %610 = vmatmul.mubr.f32.gmra.mrb[0].mxu0 %v543
  %v611 = vpop.f32.mrb[0].mxu0
  %v612 = vadd.f32 0.0, %v611
  %v613 = vpop.f32.mrb[0].mxu0
  %614 = vdwg.mxu0
  %615 = vmatprep.subr.mxu0 0.0
  %616 = vmatpush1.msra.mxu0 %v525
  %617 = vmatprep.subr.mxu0 0.0
  %618 = vmatpush1.msra.mxu0 %v526
  %619 = vmatprep.subr.mxu0 0.0
  %620 = vmatpush1.msra.mxu0 %v527
  %621 = vmatprep.subr.mxu0 0.0
  %622 = vmatpush1.msra.mxu0 %v528
  %623 = vmatprep.subr.mxu0 0.0
  %624 = vmatpush1.msra.mxu0 %v529
  %625 = vmatprep.subr.mxu0 0.0
  %626 = vmatpush1.msra.mxu0 %v530
  %627 = vmatprep.subr.mxu0 0.0
  %628 = vmatpush1.msra.mxu0 %v531
  %629 = vmatprep.subr.mxu0 0.0
  %630 = vmatpush1.msra.mxu0 %v532
  %631 = vmatprep.subr.mxu0 0.0
  %632 = vmatpush1.msra.mxu0 %v533
  %633 = vmatprep.subr.mxu0 0.0
  %634 = vmatpush1.msra.mxu0 %v534
  %635 = vmatprep.subr.mxu0 0.0
  %636 = vmatpush1.msra.mxu0 %v535
  %637 = vmatprep.subr.mxu0 0.0
  %638 = vmatpush1.msra.mxu0 %v536
  %639 = vmatprep.subr.mxu0 0.0
  %640 = vmatpush1.msra.mxu0 %v537
  %641 = vmatprep.subr.mxu0 0.0
  %642 = vmatpush1.msra.mxu0 %v538
  %643 = vmatprep.subr.mxu0 0.0
  %644 = vmatpush1.msra.mxu0 %v539
  %645 = vmatprep.subr.mxu0 0.0
  %646 = vmatpush1.msra.mxu0 %v540
  %647 = vmatprep.subr.mxu0 0.0
  %648 = vmatpush1.msra.mxu0 0.0
  %649 = vmatprep.subr.mxu0 0.0
  %650 = vmatpush1.msra.mxu0 0.0
  %651 = vmatprep.subr.mxu0 0.0
  %652 = vmatpush1.msra.mxu0 0.0
  %653 = vmatprep.subr.mxu0 0.0
  %654 = vmatpush1.msra.mxu0 0.0
  %655 = vmatprep.subr.mxu0 0.0
  %656 = vmatpush1.msra.mxu0 0.0
  %657 = vmatprep.subr.mxu0 0.0
  %658 = vmatpush1.msra.mxu0 0.0
  %659 = vmatprep.subr.mxu0 0.0
  %660 = vmatpush1.msra.mxu0 0.0
  %661 = vmatprep.subr.mxu0 0.0
  %662 = vmatpush1.msra.mxu0 0.0
  %663 = vmatprep.subr.mxu0 0.0
  %664 = vmatpush1.msra.mxu0 0.0
  %665 = vmatprep.subr.mxu0 0.0
  %666 = vmatpush1.msra.mxu0 0.0
  %667 = vmatprep.subr.mxu0 0.0
  %668 = vmatpush1.msra.mxu0 0.0
  %669 = vmatprep.subr.mxu0 0.0
  %670 = vmatpush1.msra.mxu0 0.0
  %671 = vmatprep.subr.mxu0 0.0
  %672 = vmatpush1.msra.mxu0 0.0
  %673 = vmatprep.subr.mxu0 0.0
  %674 = vmatpush1.msra.mxu0 0.0
  %675 = vmatprep.subr.mxu0 0.0
  %676 = vmatpush1.msra.mxu0 0.0
  %677 = vmatprep.subr.mxu0 0.0
  %678 = vmatpush1.msra.mxu0 0.0
  %679 = vmatprep.mubr.f32.mxu0 0.0
  %680 = vmatmul.mubr.f32.gmra.mrb[0].mxu0 %v612
  %v681 = vpop.f32.mrb[0].mxu0
  %v682 = vadd.f32 0.0, %v681
  %v683 = vpop.f32.mrb[0].mxu0
  %684 = vdwg.mxu0
  %685 = vxpose.xlu0.b32.start [1/16] %v682, 128
  %686 = vxpose.xlu0.b32.cont [2/16] 0.0, 128
  %687 = vxpose.xlu0.b32.cont [3/16] 0.0, 128
  %688 = vxpose.xlu0.b32.cont [4/16] 0.0, 128
  %689 = vxpose.xlu0.b32.cont [5/16] 0.0, 128
  %690 = vxpose.xlu0.b32.cont [6/16] 0.0, 128
  %691 = vxpose.xlu0.b32.cont [7/16] 0.0, 128
  %692 = vxpose.xlu0.b32.cont [8/16] 0.0, 128
  %693 = vxpose.xlu0.b32.cont [9/16] 0.0, 128
  %694 = vxpose.xlu0.b32.cont [10/16] 0.0, 128
  %695 = vxpose.xlu0.b32.cont [11/16] 0.0, 128
  %696 = vxpose.xlu0.b32.cont [12/16] 0.0, 128
  %697 = vxpose.xlu0.b32.cont [13/16] 0.0, 128
  %698 = vxpose.xlu0.b32.cont [14/16] 0.0, 128
  %699 = vxpose.xlu0.b32.cont [15/16] 0.0, 128
  %700 = vxpose.xlu0.b32.end [16/16] 0.0, 128
  %v701 = vpop.trf.xlu0
  %v702 = vpop.trf.xlu0
  %v703 = vpop.trf.xlu0
  %v704 = vpop.trf.xlu0
  %v705 = vpop.trf.xlu0
  %v706 = vpop.trf.xlu0
  %v707 = vpop.trf.xlu0
  %v708 = vpop.trf.xlu0
  %v709 = vpop.trf.xlu0
  %v710 = vpop.trf.xlu0
  %v711 = vpop.trf.xlu0
  %v712 = vpop.trf.xlu0
  %v713 = vpop.trf.xlu0
  %v714 = vpop.trf.xlu0
  %v715 = vpop.trf.xlu0
  %v716 = vpop.trf.xlu0
  %718 = vset.pattern.permute.xlu0 4
  %719 = vperm.xlu0 %718, %v682
  %v720 = vpop.permute.xlu0 %719
  %v722 = vlaneseq
  %v723 = vshrl.u32 %v722, 7
  %v724 = vsub.s32 0, %v723
  %v725 = vrot.slane %v701, %v724
  %v726 = vadd.f32 %v720, %v725
  %727 = vset.pattern.permute.xlu0 5
  %728 = vperm.xlu0 %727, %v682
  %v729 = vpop.permute.xlu0 %728
  %v731 = vlaneseq
  %v732 = vshrl.u32 %v731, 7
  %v733 = vsub.s32 1, %v732
  %v734 = vrot.slane %v701, %v733
  %v735 = vadd.f32 %v729, %v734
  %736 = vset.pattern.permute.xlu0 6
  %737 = vperm.xlu0 %736, %v682
  %v738 = vpop.permute.xlu0 %737
  %v740 = vlaneseq
  %v741 = vshrl.u32 %v740, 7
  %v742 = vsub.s32 2, %v741
  %v743 = vrot.slane %v701, %v742
  %v744 = vadd.f32 %v738, %v743
  %745 = vset.pattern.permute.xlu0 7
  %746 = vperm.xlu0 %745, %v682
  %v747 = vpop.permute.xlu0 %746
  %v749 = vlaneseq
  %v750 = vshrl.u32 %v749, 7
  %v751 = vsub.s32 3, %v750
  %v752 = vrot.slane %v701, %v751
  %v753 = vadd.f32 %v747, %v752
  %vm754 = vcmp.gt.f32.partialorder %v726, 0.0
  %vm755 = vcmp.gt.f32.partialorder %v735, 0.0
  %vm756 = vcmp.gt.f32.partialorder %v744, 0.0
  %vm757 = vcmp.gt.f32.partialorder %v753, 0.0
  %v758 = vmul.f32 %v726, 0.2
  %v759 = vmul.f32 %v735, 0.2
  %v760 = vmul.f32 %v744, 0.2
  %v761 = vmul.f32 %v753, 0.2
  %v762 = vsel %vm754, %v726, %v758
  %v763 = vsel %vm755, %v735, %v759
  %v764 = vsel %vm756, %v744, %v760
  %v765 = vsel %vm757, %v753, %v761
  %v766 = vadd.f32 %v762, %v518
  %v767 = vadd.f32 %v763, %v519
  %v768 = vadd.f32 %v764, %v520
  %v769 = vadd.f32 %v765, %v521
  %vm770 = vcmask 64512
  %v771 = vsel %vm770, %v766, -inf
  %772 = vmax.xlane.f32.xlu0 %v771
  %v773 = vpop.xlane.xlu0 %772
  %v774 = vsel %vm770, %v767, -inf
  %775 = vmax.xlane.f32.xlu0 %v774
  %v776 = vpop.xlane.xlu0 %775
  %v777 = vsel %vm770, %v768, -inf
  %778 = vmax.xlane.f32.xlu0 %v777
  %v779 = vpop.xlane.xlu0 %778
  %v780 = vsel %vm770, %v769, -inf
  %781 = vmax.xlane.f32.xlu0 %v780
  %v782 = vpop.xlane.xlu0 %781
  %v783 = vsub.f32 %v766, %v773
  %v784 = vsub.f32 %v767, %v776
  %v785 = vsub.f32 %v768, %v779
  %v786 = vsub.f32 %v769, %v782
  %v787 = vmul.f32 %v783, 1.442695
  %v788 = vpow.pop %v787
  %v789 = vmul.f32 %v784, 1.442695
  %v790 = vpow.pop %v789
  %v791 = vmul.f32 %v785, 1.442695
  %v792 = vpow.pop %v791
  %v793 = vmul.f32 %v786, 1.442695
  %v794 = vpow.pop %v793
  %v795 = vsel %vm770, %v788, 0.0
  %796 = vadd.xlane.f32.xlu0 %v795
  %v797 = vpop.xlane.xlu0 %796
  %v798 = vsel %vm770, %v790, 0.0
  %799 = vadd.xlane.f32.xlu0 %v798
  %v800 = vpop.xlane.xlu0 %799
  %v801 = vsel %vm770, %v792, 0.0
  %802 = vadd.xlane.f32.xlu0 %v801
  %v803 = vpop.xlane.xlu0 %802
  %v804 = vsel %vm770, %v794, 0.0
  %805 = vadd.xlane.f32.xlu0 %v804
  %v806 = vpop.xlane.xlu0 %805
  %v807 = vrcp.pop %v797
  %v808 = vmul.f32 %v788, %v807
  %v809 = vrcp.pop %v800
  %v810 = vmul.f32 %v790, %v809
  %v811 = vrcp.pop %v803
  %v812 = vmul.f32 %v792, %v811
  %v813 = vrcp.pop %v806
  %v814 = vmul.f32 %v794, %v813
  %v816 = vsel %vm770, %v808, 0
  %818 = vmatprep.subr.mxu0 0.0
  %819 = vmatpush1.msra.mxu0 %v612
  %820 = vmatprep.subr.mxu0 0.0
  %821 = vmatpush1.msra.mxu0 0.0
  %822 = vmatprep.subr.mxu0 0.0
  %823 = vmatpush1.msra.mxu0 0.0
  %824 = vmatprep.subr.mxu0 0.0
  %825 = vmatpush1.msra.mxu0 0.0
  %826 = vmatprep.subr.mxu0 0.0
  %827 = vmatpush1.msra.mxu0 0.0
  %828 = vmatprep.subr.mxu0 0.0
  %829 = vmatpush1.msra.mxu0 0.0
  %830 = vmatprep.subr.mxu0 0.0
  %831 = vmatpush1.msra.mxu0 0.0
  %832 = vmatprep.subr.mxu0 0.0
  %833 = vmatpush1.msra.mxu0 0.0
  %834 = vmatprep.subr.mxu0 0.0
  %835 = vmatpush1.msra.mxu0 0.0
  %836 = vmatprep.subr.mxu0 0.0
  %837 = vmatpush1.msra.mxu0 0.0
  %838 = vmatprep.subr.mxu0 0.0
  %839 = vmatpush1.msra.mxu0 0.0
  %840 = vmatprep.subr.mxu0 0.0
  %841 = vmatpush1.msra.mxu0 0.0
  %842 = vmatprep.subr.mxu0 0.0
  %843 = vmatpush1.msra.mxu0 0.0
  %844 = vmatprep.subr.mxu0 0.0
  %845 = vmatpush1.msra.mxu0 0.0
  %846 = vmatprep.subr.mxu0 0.0
  %847 = vmatpush1.msra.mxu0 0.0
  %848 = vmatprep.subr.mxu0 0.0
  %849 = vmatpush1.msra.mxu0 0.0
  %850 = vmatprep.subr.mxu0 0.0
  %851 = vmatpush1.msra.mxu0 0.0
  %852 = vmatprep.subr.mxu0 0.0
  %853 = vmatpush1.msra.mxu0 0.0
  %854 = vmatprep.subr.mxu0 0.0
  %855 = vmatpush1.msra.mxu0 0.0
  %856 = vmatprep.subr.mxu0 0.0
  %857 = vmatpush1.msra.mxu0 0.0
  %858 = vmatprep.subr.mxu0 0.0
  %859 = vmatpush1.msra.mxu0 0.0
  %860 = vmatprep.subr.mxu0 0.0
  %861 = vmatpush1.msra.mxu0 0.0
  %862 = vmatprep.subr.mxu0 0.0
  %863 = vmatpush1.msra.mxu0 0.0
  %864 = vmatprep.subr.mxu0 0.0
  %865 = vmatpush1.msra.mxu0 0.0
  %866 = vmatprep.subr.mxu0 0.0
  %867 = vmatpush1.msra.mxu0 0.0
  %868 = vmatprep.subr.mxu0 0.0
  %869 = vmatpush1.msra.mxu0 0.0
  %870 = vmatprep.subr.mxu0 0.0
  %871 = vmatpush1.msra.mxu0 0.0
  %872 = vmatprep.subr.mxu0 0.0
  %873 = vmatpush1.msra.mxu0 0.0
  %874 = vmatprep.subr.mxu0 0.0
  %875 = vmatpush1.msra.mxu0 0.0
  %876 = vmatprep.subr.mxu0 0.0
  %877 = vmatpush1.msra.mxu0 0.0
  %878 = vmatprep.subr.mxu0 0.0
  %879 = vmatpush1.msra.mxu0 0.0
  %880 = vmatprep.subr.mxu0 0.0
  %881 = vmatpush1.msra.mxu0 0.0
  %882 = vmatprep.mubr.f32.mxu0 0.0
  %883 = vmatmul.mubr.f32.gmra.mrb[0].mxu0 %v816
  %v884 = vpop.f32.mrb[0].mxu0
  %v885 = vadd.f32 0.0, %v884
  %v886 = vpop.f32.mrb[0].mxu0
  %887 = vdwg.mxu0
  %889 = vrot.lane.b32.xlu0 %v612, 96
  %v890 = vpop.permute.xlu0 %889
  %v893 = vsel %vm770, %v810, 0
  %895 = vmatprep.subr.mxu0 0.0
  %896 = vmatpush1.msra.mxu0 %v890
  %897 = vmatprep.subr.mxu0 0.0
  %898 = vmatpush1.msra.mxu0 0.0
  %899 = vmatprep.subr.mxu0 0.0
  %900 = vmatpush1.msra.mxu0 0.0
  %901 = vmatprep.subr.mxu0 0.0
  %902 = vmatpush1.msra.mxu0 0.0
  %903 = vmatprep.subr.mxu0 0.0
  %904 = vmatpush1.msra.mxu0 0.0
  %905 = vmatprep.subr.mxu0 0.0
  %906 = vmatpush1.msra.mxu0 0.0
  %907 = vmatprep.subr.mxu0 0.0
  %908 = vmatpush1.msra.mxu0 0.0
  %909 = vmatprep.subr.mxu0 0.0
  %910 = vmatpush1.msra.mxu0 0.0
  %911 = vmatprep.subr.mxu0 0.0
  %912 = vmatpush1.msra.mxu0 0.0
  %913 = vmatprep.subr.mxu0 0.0
  %914 = vmatpush1.msra.mxu0 0.0
  %915 = vmatprep.subr.mxu0 0.0
  %916 = vmatpush1.msra.mxu0 0.0
  %917 = vmatprep.subr.mxu0 0.0
  %918 = vmatpush1.msra.mxu0 0.0
  %919 = vmatprep.subr.mxu0 0.0
  %920 = vmatpush1.msra.mxu0 0.0
  %921 = vmatprep.subr.mxu0 0.0
  %922 = vmatpush1.msra.mxu0 0.0
  %923 = vmatprep.subr.mxu0 0.0
  %924 = vmatpush1.msra.mxu0 0.0
  %925 = vmatprep.subr.mxu0 0.0
  %926 = vmatpush1.msra.mxu0 0.0
  %927 = vmatprep.subr.mxu0 0.0
  %928 = vmatpush1.msra.mxu0 0.0
  %929 = vmatprep.subr.mxu0 0.0
  %930 = vmatpush1.msra.mxu0 0.0
  %931 = vmatprep.subr.mxu0 0.0
  %932 = vmatpush1.msra.mxu0 0.0
  %933 = vmatprep.subr.mxu0 0.0
  %934 = vmatpush1.msra.mxu0 0.0
  %935 = vmatprep.subr.mxu0 0.0
  %936 = vmatpush1.msra.mxu0 0.0
  %937 = vmatprep.subr.mxu0 0.0
  %938 = vmatpush1.msra.mxu0 0.0
  %939 = vmatprep.subr.mxu0 0.0
  %940 = vmatpush1.msra.mxu0 0.0
  %941 = vmatprep.subr.mxu0 0.0
  %942 = vmatpush1.msra.mxu0 0.0
  %943 = vmatprep.subr.mxu0 0.0
  %944 = vmatpush1.msra.mxu0 0.0
  %945 = vmatprep.subr.mxu0 0.0
  %946 = vmatpush1.msra.mxu0 0.0
  %947 = vmatprep.subr.mxu0 0.0
  %948 = vmatpush1.msra.mxu0 0.0
  %949 = vmatprep.subr.mxu0 0.0
  %950 = vmatpush1.msra.mxu0 0.0
  %951 = vmatprep.subr.mxu0 0.0
  %952 = vmatpush1.msra.mxu0 0.0
  %953 = vmatprep.subr.mxu0 0.0
  %954 = vmatpush1.msra.mxu0 0.0
  %955 = vmatprep.subr.mxu0 0.0
  %956 = vmatpush1.msra.mxu0 0.0
  %957 = vmatprep.subr.mxu0 0.0
  %958 = vmatpush1.msra.mxu0 0.0
  %959 = vmatprep.mubr.f32.mxu0 0.0
  %960 = vmatmul.mubr.f32.gmra.mrb[0].mxu0 %v893
  %v961 = vpop.f32.mrb[0].mxu0
  %v962 = vadd.f32 0.0, %v961
  %v963 = vpop.f32.mrb[0].mxu0
  %964 = vdwg.mxu0
  %965 = vrot.lane.b32.xlu0 %v612, 64
  %v966 = vpop.permute.xlu0 %965
  %v969 = vsel %vm770, %v812, 0
  %971 = vmatprep.subr.mxu0 0.0
  %972 = vmatpush1.msra.mxu0 %v966
  %973 = vmatprep.subr.mxu0 0.0
  %974 = vmatpush1.msra.mxu0 0.0
  %975 = vmatprep.subr.mxu0 0.0
  %976 = vmatpush1.msra.mxu0 0.0
  %977 = vmatprep.subr.mxu0 0.0
  %978 = vmatpush1.msra.mxu0 0.0
  %979 = vmatprep.subr.mxu0 0.0
  %980 = vmatpush1.msra.mxu0 0.0
  %981 = vmatprep.subr.mxu0 0.0
  %982 = vmatpush1.msra.mxu0 0.0
  %983 = vmatprep.subr.mxu0 0.0
  %984 = vmatpush1.msra.mxu0 0.0
  %985 = vmatprep.subr.mxu0 0.0
  %986 = vmatpush1.msra.mxu0 0.0
  %987 = vmatprep.subr.mxu0 0.0
  %988 = vmatpush1.msra.mxu0 0.0
  %989 = vmatprep.subr.mxu0 0.0
  %990 = vmatpush1.msra.mxu0 0.0
  %991 = vmatprep.subr.mxu0 0.0
  %992 = vmatpush1.msra.mxu0 0.0
  %993 = vmatprep.subr.mxu0 0.0
  %994 = vmatpush1.msra.mxu0 0.0
  %995 = vmatprep.subr.mxu0 0.0
  %996 = vmatpush1.msra.mxu0 0.0
  %997 = vmatprep.subr.mxu0 0.0
  %998 = vmatpush1.msra.mxu0 0.0
  %999 = vmatprep.subr.mxu0 0.0
  %1000 = vmatpush1.msra.mxu0 0.0
  %1001 = vmatprep.subr.mxu0 0.0
  %1002 = vmatpush1.msra.mxu0 0.0
  %1003 = vmatprep.subr.mxu0 0.0
  %1004 = vmatpush1.msra.mxu0 0.0
  %1005 = vmatprep.subr.mxu0 0.0
  %1006 = vmatpush1.msra.mxu0 0.0
  %1007 = vmatprep.subr.mxu0 0.0
  %1008 = vmatpush1.msra.mxu0 0.0
  %1009 = vmatprep.subr.mxu0 0.0
  %1010 = vmatpush1.msra.mxu0 0.0
  %1011 = vmatprep.subr.mxu0 0.0
  %1012 = vmatpush1.msra.mxu0 0.0
  %1013 = vmatprep.subr.mxu0 0.0
  %1014 = vmatpush1.msra.mxu0 0.0
  %1015 = vmatprep.subr.mxu0 0.0
  %1016 = vmatpush1.msra.mxu0 0.0
  %1017 = vmatprep.subr.mxu0 0.0
  %1018 = vmatpush1.msra.mxu0 0.0
  %1019 = vmatprep.subr.mxu0 0.0
  %1020 = vmatpush1.msra.mxu0 0.0
  %1021 = vmatprep.subr.mxu0 0.0
  %1022 = vmatpush1.msra.mxu0 0.0
  %1023 = vmatprep.subr.mxu0 0.0
  %1024 = vmatpush1.msra.mxu0 0.0
  %1025 = vmatprep.subr.mxu0 0.0
  %1026 = vmatpush1.msra.mxu0 0.0
  %1027 = vmatprep.subr.mxu0 0.0
  %1028 = vmatpush1.msra.mxu0 0.0
  %1029 = vmatprep.subr.mxu0 0.0
  %1030 = vmatpush1.msra.mxu0 0.0
  %1031 = vmatprep.subr.mxu0 0.0
  %1032 = vmatpush1.msra.mxu0 0.0
  %1033 = vmatprep.subr.mxu0 0.0
  %1034 = vmatpush1.msra.mxu0 0.0
  %1035 = vmatprep.mubr.f32.mxu0 0.0
  %1036 = vmatmul.mubr.f32.gmra.mrb[0].mxu0 %v969
  %v1037 = vpop.f32.mrb[0].mxu0
  %v1038 = vadd.f32 0.0, %v1037
  %v1039 = vpop.f32.mrb[0].mxu0
  %1040 = vdwg.mxu0
  %1041 = vrot.lane.b32.xlu0 %v612, 32
  %v1042 = vpop.permute.xlu0 %1041
  %v1045 = vsel %vm770, %v814, 0
  %1047 = vmatprep.subr.mxu0 0.0
  %1048 = vmatpush1.msra.mxu0 %v1042
  %1049 = vmatprep.subr.mxu0 0.0
  %1050 = vmatpush1.msra.mxu0 0.0
  %1051 = vmatprep.subr.mxu0 0.0
  %1052 = vmatpush1.msra.mxu0 0.0
  %1053 = vmatprep.subr.mxu0 0.0
  %1054 = vmatpush1.msra.mxu0 0.0
  %1055 = vmatprep.subr.mxu0 0.0
  %1056 = vmatpush1.msra.mxu0 0.0
  %1057 = vmatprep.subr.mxu0 0.0
  %1058 = vmatpush1.msra.mxu0 0.0
  %1059 = vmatprep.subr.mxu0 0.0
  %1060 = vmatpush1.msra.mxu0 0.0
  %1061 = vmatprep.subr.mxu0 0.0
  %1062 = vmatpush1.msra.mxu0 0.0
  %1063 = vmatprep.subr.mxu0 0.0
  %1064 = vmatpush1.msra.mxu0 0.0
  %1065 = vmatprep.subr.mxu0 0.0
  %1066 = vmatpush1.msra.mxu0 0.0
  %1067 = vmatprep.subr.mxu0 0.0
  %1068 = vmatpush1.msra.mxu0 0.0
  %1069 = vmatprep.subr.mxu0 0.0
  %1070 = vmatpush1.msra.mxu0 0.0
  %1071 = vmatprep.subr.mxu0 0.0
  %1072 = vmatpush1.msra.mxu0 0.0
  %1073 = vmatprep.subr.mxu0 0.0
  %1074 = vmatpush1.msra.mxu0 0.0
  %1075 = vmatprep.subr.mxu0 0.0
  %1076 = vmatpush1.msra.mxu0 0.0
  %1077 = vmatprep.subr.mxu0 0.0
  %1078 = vmatpush1.msra.mxu0 0.0
  %1079 = vmatprep.subr.mxu0 0.0
  %1080 = vmatpush1.msra.mxu0 0.0
  %1081 = vmatprep.subr.mxu0 0.0
  %1082 = vmatpush1.msra.mxu0 0.0
  %1083 = vmatprep.subr.mxu0 0.0
  %1084 = vmatpush1.msra.mxu0 0.0
  %1085 = vmatprep.subr.mxu0 0.0
  %1086 = vmatpush1.msra.mxu0 0.0
  %1087 = vmatprep.subr.mxu0 0.0
  %1088 = vmatpush1.msra.mxu0 0.0
  %1089 = vmatprep.subr.mxu0 0.0
  %1090 = vmatpush1.msra.mxu0 0.0
  %1091 = vmatprep.subr.mxu0 0.0
  %1092 = vmatpush1.msra.mxu0 0.0
  %1093 = vmatprep.subr.mxu0 0.0
  %1094 = vmatpush1.msra.mxu0 0.0
  %1095 = vmatprep.subr.mxu0 0.0
  %1096 = vmatpush1.msra.mxu0 0.0
  %1097 = vmatprep.subr.mxu0 0.0
  %1098 = vmatpush1.msra.mxu0 0.0
  %1099 = vmatprep.subr.mxu0 0.0
  %1100 = vmatpush1.msra.mxu0 0.0
  %1101 = vmatprep.subr.mxu0 0.0
  %1102 = vmatpush1.msra.mxu0 0.0
  %1103 = vmatprep.subr.mxu0 0.0
  %1104 = vmatpush1.msra.mxu0 0.0
  %1105 = vmatprep.subr.mxu0 0.0
  %1106 = vmatpush1.msra.mxu0 0.0
  %1107 = vmatprep.subr.mxu0 0.0
  %1108 = vmatpush1.msra.mxu0 0.0
  %1109 = vmatprep.subr.mxu0 0.0
  %1110 = vmatpush1.msra.mxu0 0.0
  %1111 = vmatprep.mubr.f32.mxu0 0.0
  %1112 = vmatmul.mubr.f32.gmra.mrb[0].mxu0 %v1045
  %v1113 = vpop.f32.mrb[0].mxu0
  %v1114 = vadd.f32 0.0, %v1113
  %v1115 = vpop.f32.mrb[0].mxu0
  %1116 = vdwg.mxu0
  %1118 = vrot.lane.b32.xlu0 %v962, 32
  %v1119 = vpop.permute.xlu0 %1118
  %1122 = vrot.lane.b32.xlu0 %v1038, 64
  %v1123 = vpop.permute.xlu0 %1122
  %1126 = vrot.lane.b32.xlu0 %v1114, 96
  %v1127 = vpop.permute.xlu0 %1126
  %v1129 = vsel %vm128, %v885, %v1119
  %vm1130 = vcmask 523264
  %v1131 = vsel %vm1130, %v1129, %v1123
  %vm1132 = vcmask 785408
  %v1133 = vsel %vm1132, %v1131, %v1127
  %v1134 = vlaneseq
  %v1135 = vshrl.u32 %v1134, 7
  %v1136 = vsub.s32 0, %v1135
  %v1137 = vrot.slane %v27, %v1136
  %v1138 = vadd.f32 %v1133, %v1137
  %v1139 = vld [vmem:[%s5 + $0x10] sm:$0xff]
  %v1140 = vld [vmem:[%s5 + $0x18] sm:$0xff]
  %v1141 = vld [vmem:[%s5 + $0x20] sm:$0xff]
  %v1142 = vld [vmem:[%s5 + $0x28] sm:$0xff]
  %v1143 = vld [vmem:[%s5 + $0x30] sm:$0xff]
  %v1144 = vld [vmem:[%s5 + $0x38] sm:$0xff]
  %v1145 = vld [vmem:[%s5 + $0x40] sm:$0xff]
  %v1146 = vld [vmem:[%s5 + $0x48] sm:$0xff]
  %v1147 = vld [vmem:[%s5 + $0x50] sm:$0xff]
  %v1148 = vld [vmem:[%s5 + $0x58] sm:$0xff]
  %v1149 = vld [vmem:[%s5 + $0x60] sm:$0xff]
  %v1150 = vld [vmem:[%s5 + $0x68] sm:$0xff]
  %v1151 = vld [vmem:[%s5 + $0x70] sm:$0xff]
  %v1152 = vld [vmem:[%s5 + $0x78] sm:$0xff]
  %v1153 = vld [vmem:[%s5 + $0x80] sm:$0xff]
  %v1154 = vld [vmem:[%s5 + $0x88] sm:$0xff]
  %v1155 = vld [vmem:[%s4 + $0x420] sm:$0xff]
  %v1156 = vld [vmem:[%s4 + $0x428] sm:$0xff]
  %v1157 = vld [vmem:[%s4 + $0x430] sm:$0xff]
  %v1158 = vld [vmem:[%s4 + $0x438] sm:$0xff]
  %v1159 = vld [vmem:[%s4 + $0x440] sm:$0xff]
  %v1160 = vld [vmem:[%s4 + $0x448] sm:$0xff]
  %v1161 = vld [vmem:[%s4 + $0x450] sm:$0xff]
  %v1162 = vld [vmem:[%s4 + $0x458] sm:$0xff]
  %v1163 = vld [vmem:[%s4 + $0x460] sm:$0xff]
  %v1164 = vld [vmem:[%s4 + $0x468] sm:$0xff]
  %v1165 = vld [vmem:[%s4 + $0x470] sm:$0xff]
  %v1166 = vld [vmem:[%s4 + $0x478] sm:$0xff]
  %v1167 = vld [vmem:[%s4 + $0x480] sm:$0xff]
  %v1168 = vld [vmem:[%s4 + $0x488] sm:$0xff]
  %v1169 = vld [vmem:[%s4 + $0x490] sm:$0xff]
  %v1170 = vld [vmem:[%s4 + $0x498] sm:$0xff]
  %1171 = vmatprep.subr.mxu0 0.0
  %1172 = vmatpush1.msra.mxu0 %v1139
  %1173 = vmatprep.subr.mxu0 0.0
  %1174 = vmatpush1.msra.mxu0 %v1140
  %1175 = vmatprep.subr.mxu0 0.0
  %1176 = vmatpush1.msra.mxu0 %v1141
  %1177 = vmatprep.subr.mxu0 0.0
  %1178 = vmatpush1.msra.mxu0 %v1142
  %1179 = vmatprep.subr.mxu0 0.0
  %1180 = vmatpush1.msra.mxu0 %v1143
  %1181 = vmatprep.subr.mxu0 0.0
  %1182 = vmatpush1.msra.mxu0 %v1144
  %1183 = vmatprep.subr.mxu0 0.0
  %1184 = vmatpush1.msra.mxu0 %v1145
  %1185 = vmatprep.subr.mxu0 0.0
  %1186 = vmatpush1.msra.mxu0 %v1146
  %1187 = vmatprep.subr.mxu0 0.0
  %1188 = vmatpush1.msra.mxu0 %v1147
  %1189 = vmatprep.subr.mxu0 0.0
  %1190 = vmatpush1.msra.mxu0 %v1148
  %1191 = vmatprep.subr.mxu0 0.0
  %1192 = vmatpush1.msra.mxu0 %v1149
  %1193 = vmatprep.subr.mxu0 0.0
  %1194 = vmatpush1.msra.mxu0 %v1150
  %1195 = vmatprep.subr.mxu0 0.0
  %1196 = vmatpush1.msra.mxu0 %v1151
  %1197 = vmatprep.subr.mxu0 0.0
  %1198 = vmatpush1.msra.mxu0 %v1152
  %1199 = vmatprep.subr.mxu0 0.0
  %1200 = vmatpush1.msra.mxu0 %v1153
  %1201 = vmatprep.subr.mxu0 0.0
  %1202 = vmatpush1.msra.mxu0 %v1154
  %1203 = vmatprep.subr.mxu0 0.0
  %1204 = vmatpush1.msra.mxu0 0.0
  %1205 = vmatprep.subr.mxu0 0.0
  %1206 = vmatpush1.msra.mxu0 0.0
  %1207 = vmatprep.subr.mxu0 0.0
  %1208 = vmatpush1.msra.mxu0 0.0
  %1209 = vmatprep.subr.mxu0 0.0
  %1210 = vmatpush1.msra.mxu0 0.0
  %1211 = vmatprep.subr.mxu0 0.0
  %1212 = vmatpush1.msra.mxu0 0.0
  %1213 = vmatprep.subr.mxu0 0.0
  %1214 = vmatpush1.msra.mxu0 0.0
  %1215 = vmatprep.subr.mxu0 0.0
  %1216 = vmatpush1.msra.mxu0 0.0
  %1217 = vmatprep.subr.mxu0 0.0
  %1218 = vmatpush1.msra.mxu0 0.0
  %1219 = vmatprep.subr.mxu0 0.0
  %1220 = vmatpush1.msra.mxu0 0.0
  %1221 = vmatprep.subr.mxu0 0.0
  %1222 = vmatpush1.msra.mxu0 0.0
  %1223 = vmatprep.subr.mxu0 0.0
  %1224 = vmatpush1.msra.mxu0 0.0
  %1225 = vmatprep.subr.mxu0 0.0
  %1226 = vmatpush1.msra.mxu0 0.0
  %1227 = vmatprep.subr.mxu0 0.0
  %1228 = vmatpush1.msra.mxu0 0.0
  %1229 = vmatprep.subr.mxu0 0.0
  %1230 = vmatpush1.msra.mxu0 0.0
  %1231 = vmatprep.subr.mxu0 0.0
  %1232 = vmatpush1.msra.mxu0 0.0
  %1233 = vmatprep.subr.mxu0 0.0
  %1234 = vmatpush1.msra.mxu0 0.0
  %1235 = vmatprep.mubr.f32.mxu0 0.0
  %1236 = vmatmul.mubr.f32.gmra.mrb[0].mxu0 %v1138
  %v1237 = vpop.f32.mrb[0].mxu0
  %v1238 = vadd.f32 0.0, %v1237
  %v1239 = vpop.f32.mrb[0].mxu0
  %1240 = vdwg.mxu0
  %1241 = vmatprep.subr.mxu0 0.0
  %1242 = vmatpush1.msra.mxu0 %v1155
  %1243 = vmatprep.subr.mxu0 0.0
  %1244 = vmatpush1.msra.mxu0 %v1156
  %1245 = vmatprep.subr.mxu0 0.0
  %1246 = vmatpush1.msra.mxu0 %v1157
  %1247 = vmatprep.subr.mxu0 0.0
  %1248 = vmatpush1.msra.mxu0 %v1158
  %1249 = vmatprep.subr.mxu0 0.0
  %1250 = vmatpush1.msra.mxu0 %v1159
  %1251 = vmatprep.subr.mxu0 0.0
  %1252 = vmatpush1.msra.mxu0 %v1160
  %1253 = vmatprep.subr.mxu0 0.0
  %1254 = vmatpush1.msra.mxu0 %v1161
  %1255 = vmatprep.subr.mxu0 0.0
  %1256 = vmatpush1.msra.mxu0 %v1162
  %1257 = vmatprep.subr.mxu0 0.0
  %1258 = vmatpush1.msra.mxu0 %v1163
  %1259 = vmatprep.subr.mxu0 0.0
  %1260 = vmatpush1.msra.mxu0 %v1164
  %1261 = vmatprep.subr.mxu0 0.0
  %1262 = vmatpush1.msra.mxu0 %v1165
  %1263 = vmatprep.subr.mxu0 0.0
  %1264 = vmatpush1.msra.mxu0 %v1166
  %1265 = vmatprep.subr.mxu0 0.0
  %1266 = vmatpush1.msra.mxu0 %v1167
  %1267 = vmatprep.subr.mxu0 0.0
  %1268 = vmatpush1.msra.mxu0 %v1168
  %1269 = vmatprep.subr.mxu0 0.0
  %1270 = vmatpush1.msra.mxu0 %v1169
  %1271 = vmatprep.subr.mxu0 0.0
  %1272 = vmatpush1.msra.mxu0 %v1170
  %1273 = vmatprep.subr.mxu0 0.0
  %1274 = vmatpush1.msra.mxu0 0.0
  %1275 = vmatprep.subr.mxu0 0.0
  %1276 = vmatpush1.msra.mxu0 0.0
  %1277 = vmatprep.subr.mxu0 0.0
  %1278 = vmatpush1.msra.mxu0 0.0
  %1279 = vmatprep.subr.mxu0 0.0
  %1280 = vmatpush1.msra.mxu0 0.0
  %1281 = vmatprep.subr.mxu0 0.0
  %1282 = vmatpush1.msra.mxu0 0.0
  %1283 = vmatprep.subr.mxu0 0.0
  %1284 = vmatpush1.msra.mxu0 0.0
  %1285 = vmatprep.subr.mxu0 0.0
  %1286 = vmatpush1.msra.mxu0 0.0
  %1287 = vmatprep.subr.mxu0 0.0
  %1288 = vmatpush1.msra.mxu0 0.0
  %1289 = vmatprep.subr.mxu0 0.0
  %1290 = vmatpush1.msra.mxu0 0.0
  %1291 = vmatprep.subr.mxu0 0.0
  %1292 = vmatpush1.msra.mxu0 0.0
  %1293 = vmatprep.subr.mxu0 0.0
  %1294 = vmatpush1.msra.mxu0 0.0
  %1295 = vmatprep.subr.mxu0 0.0
  %1296 = vmatpush1.msra.mxu0 0.0
  %1297 = vmatprep.subr.mxu0 0.0
  %1298 = vmatpush1.msra.mxu0 0.0
  %1299 = vmatprep.subr.mxu0 0.0
  %1300 = vmatpush1.msra.mxu0 0.0
  %1301 = vmatprep.subr.mxu0 0.0
  %1302 = vmatpush1.msra.mxu0 0.0
  %1303 = vmatprep.subr.mxu0 0.0
  %1304 = vmatpush1.msra.mxu0 0.0
  %1305 = vmatprep.mubr.f32.mxu0 0.0
  %1306 = vmatmul.mubr.f32.gmra.mrb[0].mxu0 %v1238
  %v1307 = vpop.f32.mrb[0].mxu0
  %v1308 = vadd.f32 0.0, %v1307
  %v1309 = vpop.f32.mrb[0].mxu0
  %1310 = vdwg.mxu0
  %1311 = vxpose.xlu0.b32.start [1/16] %v1308, 128
  %1312 = vxpose.xlu0.b32.cont [2/16] 0.0, 128
  %1313 = vxpose.xlu0.b32.cont [3/16] 0.0, 128
  %1314 = vxpose.xlu0.b32.cont [4/16] 0.0, 128
  %1315 = vxpose.xlu0.b32.cont [5/16] 0.0, 128
  %1316 = vxpose.xlu0.b32.cont [6/16] 0.0, 128
  %1317 = vxpose.xlu0.b32.cont [7/16] 0.0, 128
  %1318 = vxpose.xlu0.b32.cont [8/16] 0.0, 128
  %1319 = vxpose.xlu0.b32.cont [9/16] 0.0, 128
  %1320 = vxpose.xlu0.b32.cont [10/16] 0.0, 128
  %1321 = vxpose.xlu0.b32.cont [11/16] 0.0, 128
  %1322 = vxpose.xlu0.b32.cont [12/16] 0.0, 128
  %1323 = vxpose.xlu0.b32.cont [13/16] 0.0, 128
  %1324 = vxpose.xlu0.b32.cont [14/16] 0.0, 128
  %1325 = vxpose.xlu0.b32.cont [15/16] 0.0, 128
  %1326 = vxpose.xlu0.b32.end [16/16] 0.0, 128
  %v1327 = vpop.trf.xlu0
  %v1328 = vpop.trf.xlu0
  %v1329 = vpop.trf.xlu0
  %v1330 = vpop.trf.xlu0
  %v1331 = vpop.trf.xlu0
  %v1332 = vpop.trf.xlu0
  %v1333 = vpop.trf.xlu0
  %v1334 = vpop.trf.xlu0
  %v1335 = vpop.trf.xlu0
  %v1336 = vpop.trf.xlu0
  %v1337 = vpop.trf.xlu0
  %v1338 = vpop.trf.xlu0
  %v1339 = vpop.trf.xlu0
  %v1340 = vpop.trf.xlu0
  %v1341 = vpop.trf.xlu0
  %v1342 = vpop.trf.xlu0
  %1344 = vset.pattern.permute.xlu0 2
  %1345 = vperm.xlu0 %1344, %v1308
  %v1346 = vpop.permute.xlu0 %1345
  %v1348 = vlaneseq
  %v1349 = vshrl.u32 %v1348, 7
  %v1350 = vsub.s32 0, %v1349
  %v1351 = vrot.slane %v1327, %v1350
  %v1352 = vadd.f32 %v1346, %v1351
  %1353 = vset.pattern.permute.xlu0 3
  %1354 = vperm.xlu0 %1353, %v1308
  %v1355 = vpop.permute.xlu0 %1354
  %v1357 = vlaneseq
  %v1358 = vshrl.u32 %v1357, 7
  %v1359 = vsub.s32 1, %v1358
  %v1360 = vrot.slane %v1327, %v1359
  %v1361 = vadd.f32 %v1355, %v1360
  %vm1362 = vcmp.gt.f32.partialorder %v1352, 0.0
  %vm1363 = vcmp.gt.f32.partialorder %v1361, 0.0
  %v1364 = vmul.f32 %v1352, 0.2
  %v1365 = vmul.f32 %v1361, 0.2
  %v1366 = vsel %vm1362, %v1352, %v1364
  %v1367 = vsel %vm1363, %v1361, %v1365
  %v1368 = vadd.f32 %v1366, %v518
  %v1369 = vadd.f32 %v1367, %v519
  %v1370 = vsel %vm770, %v1368, -inf
  %1371 = vmax.xlane.f32.xlu0 %v1370
  %v1372 = vpop.xlane.xlu0 %1371
  %v1373 = vsel %vm770, %v1369, -inf
  %1374 = vmax.xlane.f32.xlu0 %v1373
  %v1375 = vpop.xlane.xlu0 %1374
  %v1376 = vsub.f32 %v1368, %v1372
  %v1377 = vsub.f32 %v1369, %v1375
  %v1378 = vmul.f32 %v1376, 1.442695
  %v1379 = vpow.pop %v1378
  %v1380 = vmul.f32 %v1377, 1.442695
  %v1381 = vpow.pop %v1380
  %v1382 = vsel %vm770, %v1379, 0.0
  %1383 = vadd.xlane.f32.xlu0 %v1382
  %v1384 = vpop.xlane.xlu0 %1383
  %v1385 = vsel %vm770, %v1381, 0.0
  %1386 = vadd.xlane.f32.xlu0 %v1385
  %v1387 = vpop.xlane.xlu0 %1386
  %v1388 = vrcp.pop %v1384
  %v1389 = vmul.f32 %v1379, %v1388
  %v1390 = vrcp.pop %v1387
  %v1391 = vmul.f32 %v1381, %v1390
  %v1393 = vsel %vm770, %v1389, 0
  %1395 = vmatprep.subr.mxu0 0.0
  %1396 = vmatpush1.msra.mxu0 %v1238
  %1397 = vmatprep.subr.mxu0 0.0
  %1398 = vmatpush1.msra.mxu0 0.0
  %1399 = vmatprep.subr.mxu0 0.0
  %1400 = vmatpush1.msra.mxu0 0.0
  %1401 = vmatprep.subr.mxu0 0.0
  %1402 = vmatpush1.msra.mxu0 0.0
  %1403 = vmatprep.subr.mxu0 0.0
  %1404 = vmatpush1.msra.mxu0 0.0
  %1405 = vmatprep.subr.mxu0 0.0
  %1406 = vmatpush1.msra.mxu0 0.0
  %1407 = vmatprep.subr.mxu0 0.0
  %1408 = vmatpush1.msra.mxu0 0.0
  %1409 = vmatprep.subr.mxu0 0.0
  %1410 = vmatpush1.msra.mxu0 0.0
  %1411 = vmatprep.subr.mxu0 0.0
  %1412 = vmatpush1.msra.mxu0 0.0
  %1413 = vmatprep.subr.mxu0 0.0
  %1414 = vmatpush1.msra.mxu0 0.0
  %1415 = vmatprep.subr.mxu0 0.0
  %1416 = vmatpush1.msra.mxu0 0.0
  %1417 = vmatprep.subr.mxu0 0.0
  %1418 = vmatpush1.msra.mxu0 0.0
  %1419 = vmatprep.subr.mxu0 0.0
  %1420 = vmatpush1.msra.mxu0 0.0
  %1421 = vmatprep.subr.mxu0 0.0
  %1422 = vmatpush1.msra.mxu0 0.0
  %1423 = vmatprep.subr.mxu0 0.0
  %1424 = vmatpush1.msra.mxu0 0.0
  %1425 = vmatprep.subr.mxu0 0.0
  %1426 = vmatpush1.msra.mxu0 0.0
  %1427 = vmatprep.subr.mxu0 0.0
  %1428 = vmatpush1.msra.mxu0 0.0
  %1429 = vmatprep.subr.mxu0 0.0
  %1430 = vmatpush1.msra.mxu0 0.0
  %1431 = vmatprep.subr.mxu0 0.0
  %1432 = vmatpush1.msra.mxu0 0.0
  %1433 = vmatprep.subr.mxu0 0.0
  %1434 = vmatpush1.msra.mxu0 0.0
  %1435 = vmatprep.subr.mxu0 0.0
  %1436 = vmatpush1.msra.mxu0 0.0
  %1437 = vmatprep.subr.mxu0 0.0
  %1438 = vmatpush1.msra.mxu0 0.0
  %1439 = vmatprep.subr.mxu0 0.0
  %1440 = vmatpush1.msra.mxu0 0.0
  %1441 = vmatprep.subr.mxu0 0.0
  %1442 = vmatpush1.msra.mxu0 0.0
  %1443 = vmatprep.subr.mxu0 0.0
  %1444 = vmatpush1.msra.mxu0 0.0
  %1445 = vmatprep.subr.mxu0 0.0
  %1446 = vmatpush1.msra.mxu0 0.0
  %1447 = vmatprep.subr.mxu0 0.0
  %1448 = vmatpush1.msra.mxu0 0.0
  %1449 = vmatprep.subr.mxu0 0.0
  %1450 = vmatpush1.msra.mxu0 0.0
  %1451 = vmatprep.subr.mxu0 0.0
  %1452 = vmatpush1.msra.mxu0 0.0
  %1453 = vmatprep.subr.mxu0 0.0
  %1454 = vmatpush1.msra.mxu0 0.0
  %1455 = vmatprep.subr.mxu0 0.0
  %1456 = vmatpush1.msra.mxu0 0.0
  %1457 = vmatprep.subr.mxu0 0.0
  %1458 = vmatpush1.msra.mxu0 0.0
  %1459 = vmatprep.mubr.f32.mxu0 0.0
  %1460 = vmatmul.mubr.f32.gmra.mrb[0].mxu0 %v1393
  %v1461 = vpop.f32.mrb[0].mxu0
  %v1462 = vadd.f32 0.0, %v1461
  %v1463 = vpop.f32.mrb[0].mxu0
  %1464 = vdwg.mxu0
  %1466 = vrot.lane.b32.xlu0 %v1238, 96
  %v1467 = vpop.permute.xlu0 %1466
  %v1470 = vsel %vm770, %v1391, 0
  %1472 = vmatprep.subr.mxu0 0.0
  %1473 = vmatpush1.msra.mxu0 %v1467
  %1474 = vmatprep.subr.mxu0 0.0
  %1475 = vmatpush1.msra.mxu0 0.0
  %1476 = vmatprep.subr.mxu0 0.0
  %1477 = vmatpush1.msra.mxu0 0.0
  %1478 = vmatprep.subr.mxu0 0.0
  %1479 = vmatpush1.msra.mxu0 0.0
  %1480 = vmatprep.subr.mxu0 0.0
  %1481 = vmatpush1.msra.mxu0 0.0
  %1482 = vmatprep.subr.mxu0 0.0
  %1483 = vmatpush1.msra.mxu0 0.0
  %1484 = vmatprep.subr.mxu0 0.0
  %1485 = vmatpush1.msra.mxu0 0.0
  %1486 = vmatprep.subr.mxu0 0.0
  %1487 = vmatpush1.msra.mxu0 0.0
  %1488 = vmatprep.subr.mxu0 0.0
  %1489 = vmatpush1.msra.mxu0 0.0
  %1490 = vmatprep.subr.mxu0 0.0
  %1491 = vmatpush1.msra.mxu0 0.0
  %1492 = vmatprep.subr.mxu0 0.0
  %1493 = vmatpush1.msra.mxu0 0.0
  %1494 = vmatprep.subr.mxu0 0.0
  %1495 = vmatpush1.msra.mxu0 0.0
  %1496 = vmatprep.subr.mxu0 0.0
  %1497 = vmatpush1.msra.mxu0 0.0
  %1498 = vmatprep.subr.mxu0 0.0
  %1499 = vmatpush1.msra.mxu0 0.0
  %1500 = vmatprep.subr.mxu0 0.0
  %1501 = vmatpush1.msra.mxu0 0.0
  %1502 = vmatprep.subr.mxu0 0.0
  %1503 = vmatpush1.msra.mxu0 0.0
  %1504 = vmatprep.subr.mxu0 0.0
  %1505 = vmatpush1.msra.mxu0 0.0
  %1506 = vmatprep.subr.mxu0 0.0
  %1507 = vmatpush1.msra.mxu0 0.0
  %1508 = vmatprep.subr.mxu0 0.0
  %1509 = vmatpush1.msra.mxu0 0.0
  %1510 = vmatprep.subr.mxu0 0.0
  %1511 = vmatpush1.msra.mxu0 0.0
  %1512 = vmatprep.subr.mxu0 0.0
  %1513 = vmatpush1.msra.mxu0 0.0
  %1514 = vmatprep.subr.mxu0 0.0
  %1515 = vmatpush1.msra.mxu0 0.0
  %1516 = vmatprep.subr.mxu0 0.0
  %1517 = vmatpush1.msra.mxu0 0.0
  %1518 = vmatprep.subr.mxu0 0.0
  %1519 = vmatpush1.msra.mxu0 0.0
  %1520 = vmatprep.subr.mxu0 0.0
  %1521 = vmatpush1.msra.mxu0 0.0
  %1522 = vmatprep.subr.mxu0 0.0
  %1523 = vmatpush1.msra.mxu0 0.0
  %1524 = vmatprep.subr.mxu0 0.0
  %1525 = vmatpush1.msra.mxu0 0.0
  %1526 = vmatprep.subr.mxu0 0.0
  %1527 = vmatpush1.msra.mxu0 0.0
  %1528 = vmatprep.subr.mxu0 0.0
  %1529 = vmatpush1.msra.mxu0 0.0
  %1530 = vmatprep.subr.mxu0 0.0
  %1531 = vmatpush1.msra.mxu0 0.0
  %1532 = vmatprep.subr.mxu0 0.0
  %1533 = vmatpush1.msra.mxu0 0.0
  %1534 = vmatprep.subr.mxu0 0.0
  %1535 = vmatpush1.msra.mxu0 0.0
  %1536 = vmatprep.mubr.f32.mxu0 0.0
  %1537 = vmatmul.mubr.f32.gmra.mrb[0].mxu0 %v1470
  %v1538 = vpop.f32.mrb[0].mxu0
  %v1539 = vadd.f32 0.0, %v1538
  %v1540 = vpop.f32.mrb[0].mxu0
  %1541 = vdwg.mxu0
  %1543 = vrot.lane.b32.xlu0 %v1539, 32
  %v1544 = vpop.permute.xlu0 %1543
  %v1546 = vsel %vm128, %v1462, %v1544
  %v1547 = vld [vmem:[%s4 + $0x4a0] sm:$0xff]
  %v1548 = vld [vmem:[%s4 + $0x4a8] sm:$0xff]
  %v1549 = vld [vmem:[%s4 + $0x4b0] sm:$0xff]
  %v1550 = vld [vmem:[%s4 + $0x4b8] sm:$0xff]
  %v1551 = vld [vmem:[%s4 + $0x4c0] sm:$0xff]
  %v1552 = vld [vmem:[%s4 + $0x4c8] sm:$0xff]
  %v1553 = vld [vmem:[%s4 + $0x4d0] sm:$0xff]
  %v1554 = vld [vmem:[%s4 + $0x4d8] sm:$0xff]
  %v1555 = vlaneseq
  %v1556 = vshrl.u32 %v1555, 7
  %v1557 = vsub.s32 3, %v1556
  %v1558 = vrot.slane %v26, %v1557
  %v1560 = vsel %vm1130, %v1546, 0
  %1562 = vmatprep.subr.mxu0 0.0
  %1563 = vmatpush1.msra.mxu0 %v1547
  %1564 = vmatprep.subr.mxu0 0.0
  %1565 = vmatpush1.msra.mxu0 %v1548
  %1566 = vmatprep.subr.mxu0 0.0
  %1567 = vmatpush1.msra.mxu0 %v1549
  %1568 = vmatprep.subr.mxu0 0.0
  %1569 = vmatpush1.msra.mxu0 %v1550
  %1570 = vmatprep.subr.mxu0 0.0
  %1571 = vmatpush1.msra.mxu0 %v1551
  %1572 = vmatprep.subr.mxu0 0.0
  %1573 = vmatpush1.msra.mxu0 %v1552
  %1574 = vmatprep.subr.mxu0 0.0
  %1575 = vmatpush1.msra.mxu0 %v1553
  %1576 = vmatprep.subr.mxu0 0.0
  %1577 = vmatpush1.msra.mxu0 %v1554
  %1578 = vmatprep.subr.mxu0 0.0
  %1579 = vmatpush1.msra.mxu0 0.0
  %1580 = vmatprep.subr.mxu0 0.0
  %1581 = vmatpush1.msra.mxu0 0.0
  %1582 = vmatprep.subr.mxu0 0.0
  %1583 = vmatpush1.msra.mxu0 0.0
  %1584 = vmatprep.subr.mxu0 0.0
  %1585 = vmatpush1.msra.mxu0 0.0
  %1586 = vmatprep.subr.mxu0 0.0
  %1587 = vmatpush1.msra.mxu0 0.0
  %1588 = vmatprep.subr.mxu0 0.0
  %1589 = vmatpush1.msra.mxu0 0.0
  %1590 = vmatprep.subr.mxu0 0.0
  %1591 = vmatpush1.msra.mxu0 0.0
  %1592 = vmatprep.subr.mxu0 0.0
  %1593 = vmatpush1.msra.mxu0 0.0
  %1594 = vmatprep.subr.mxu0 0.0
  %1595 = vmatpush1.msra.mxu0 0.0
  %1596 = vmatprep.subr.mxu0 0.0
  %1597 = vmatpush1.msra.mxu0 0.0
  %1598 = vmatprep.subr.mxu0 0.0
  %1599 = vmatpush1.msra.mxu0 0.0
  %1600 = vmatprep.subr.mxu0 0.0
  %1601 = vmatpush1.msra.mxu0 0.0
  %1602 = vmatprep.subr.mxu0 0.0
  %1603 = vmatpush1.msra.mxu0 0.0
  %1604 = vmatprep.subr.mxu0 0.0
  %1605 = vmatpush1.msra.mxu0 0.0
  %1606 = vmatprep.subr.mxu0 0.0
  %1607 = vmatpush1.msra.mxu0 0.0
  %1608 = vmatprep.subr.mxu0 0.0
  %1609 = vmatpush1.msra.mxu0 0.0
  %1610 = vmatprep.subr.mxu0 0.0
  %1611 = vmatpush1.msra.mxu0 0.0
  %1612 = vmatprep.subr.mxu0 0.0
  %1613 = vmatpush1.msra.mxu0 0.0
  %1614 = vmatprep.subr.mxu0 0.0
  %1615 = vmatpush1.msra.mxu0 0.0
  %1616 = vmatprep.subr.mxu0 0.0
  %1617 = vmatpush1.msra.mxu0 0.0
  %1618 = vmatprep.subr.mxu0 0.0
  %1619 = vmatpush1.msra.mxu0 0.0
  %1620 = vmatprep.subr.mxu0 0.0
  %1621 = vmatpush1.msra.mxu0 0.0
  %1622 = vmatprep.subr.mxu0 0.0
  %1623 = vmatpush1.msra.mxu0 0.0
  %1624 = vmatprep.subr.mxu0 0.0
  %1625 = vmatpush1.msra.mxu0 0.0
  %1626 = vmatprep.mubr.f32.mxu0 0.0
  %1627 = vmatmul.mubr.f32.gmra.mrb[0].mxu0 %v1560
  %v1628 = vpop.f32.mrb[0].mxu0
  %v1629 = vadd.f32 %v1558, %v1628
  %v1630 = vpop.f32.mrb[0].mxu0
  %1631 = vdwg.mxu0
  %1633 = vrot.lane.b32.xlu0 %v515, 32
  %v1634 = vpop.permute.xlu0 %1633
  %1637 = vrot.lane.b32.xlu0 %v1629, 64
  %v1638 = vpop.permute.xlu0 %1637
  %v1640 = vsel %vm128, %v199, %v1634
  %v1641 = vsel %vm1130, %v1640, %v1638
  %v1642 = vld [vmem:[%s4 + $0x4e0] sm:$0xff]
  %v1643 = vld [vmem:[%s4 + $0x4e8] sm:$0xff]
  %v1644 = vld [vmem:[%s4 + $0x4f0] sm:$0xff]
  %v1645 = vld [vmem:[%s4 + $0x4f8] sm:$0xff]
  %v1646 = vld [vmem:[%s4 + $0x500] sm:$0xff]
  %v1647 = vld [vmem:[%s4 + $0x508] sm:$0xff]
  %v1648 = vld [vmem:[%s4 + $0x510] sm:$0xff]
  %v1649 = vld [vmem:[%s4 + $0x518] sm:$0xff]
  %v1650 = vld [vmem:[%s4 + $0x520] sm:$0xff]
  %v1651 = vld [vmem:[%s4 + $0x528] sm:$0xff]
  %v1652 = vld [vmem:[%s4 + $0x530] sm:$0xff]
  %v1653 = vld [vmem:[%s4 + $0x538] sm:$0xff]
  %v1654 = vlaneseq
  %v1655 = vshrl.u32 %v1654, 7
  %v1656 = vsub.s32 4, %v1655
  %v1657 = vrot.slane %v26, %v1656
  %v1659 = vsel %vm1132, %v1641, 0
  %1661 = vmatprep.subr.mxu0 0.0
  %1662 = vmatpush1.msra.mxu0 %v1642
  %1663 = vmatprep.subr.mxu0 0.0
  %1664 = vmatpush1.msra.mxu0 %v1643
  %1665 = vmatprep.subr.mxu0 0.0
  %1666 = vmatpush1.msra.mxu0 %v1644
  %1667 = vmatprep.subr.mxu0 0.0
  %1668 = vmatpush1.msra.mxu0 %v1645
  %1669 = vmatprep.subr.mxu0 0.0
  %1670 = vmatpush1.msra.mxu0 %v1646
  %1671 = vmatprep.subr.mxu0 0.0
  %1672 = vmatpush1.msra.mxu0 %v1647
  %1673 = vmatprep.subr.mxu0 0.0
  %1674 = vmatpush1.msra.mxu0 %v1648
  %1675 = vmatprep.subr.mxu0 0.0
  %1676 = vmatpush1.msra.mxu0 %v1649
  %1677 = vmatprep.subr.mxu0 0.0
  %1678 = vmatpush1.msra.mxu0 %v1650
  %1679 = vmatprep.subr.mxu0 0.0
  %1680 = vmatpush1.msra.mxu0 %v1651
  %1681 = vmatprep.subr.mxu0 0.0
  %1682 = vmatpush1.msra.mxu0 %v1652
  %1683 = vmatprep.subr.mxu0 0.0
  %1684 = vmatpush1.msra.mxu0 %v1653
  %1685 = vmatprep.subr.mxu0 0.0
  %1686 = vmatpush1.msra.mxu0 0.0
  %1687 = vmatprep.subr.mxu0 0.0
  %1688 = vmatpush1.msra.mxu0 0.0
  %1689 = vmatprep.subr.mxu0 0.0
  %1690 = vmatpush1.msra.mxu0 0.0
  %1691 = vmatprep.subr.mxu0 0.0
  %1692 = vmatpush1.msra.mxu0 0.0
  %1693 = vmatprep.subr.mxu0 0.0
  %1694 = vmatpush1.msra.mxu0 0.0
  %1695 = vmatprep.subr.mxu0 0.0
  %1696 = vmatpush1.msra.mxu0 0.0
  %1697 = vmatprep.subr.mxu0 0.0
  %1698 = vmatpush1.msra.mxu0 0.0
  %1699 = vmatprep.subr.mxu0 0.0
  %1700 = vmatpush1.msra.mxu0 0.0
  %1701 = vmatprep.subr.mxu0 0.0
  %1702 = vmatpush1.msra.mxu0 0.0
  %1703 = vmatprep.subr.mxu0 0.0
  %1704 = vmatpush1.msra.mxu0 0.0
  %1705 = vmatprep.subr.mxu0 0.0
  %1706 = vmatpush1.msra.mxu0 0.0
  %1707 = vmatprep.subr.mxu0 0.0
  %1708 = vmatpush1.msra.mxu0 0.0
  %1709 = vmatprep.subr.mxu0 0.0
  %1710 = vmatpush1.msra.mxu0 0.0
  %1711 = vmatprep.subr.mxu0 0.0
  %1712 = vmatpush1.msra.mxu0 0.0
  %1713 = vmatprep.subr.mxu0 0.0
  %1714 = vmatpush1.msra.mxu0 0.0
  %1715 = vmatprep.subr.mxu0 0.0
  %1716 = vmatpush1.msra.mxu0 0.0
  %1717 = vmatprep.subr.mxu0 0.0
  %1718 = vmatpush1.msra.mxu0 0.0
  %1719 = vmatprep.subr.mxu0 0.0
  %1720 = vmatpush1.msra.mxu0 0.0
  %1721 = vmatprep.subr.mxu0 0.0
  %1722 = vmatpush1.msra.mxu0 0.0
  %1723 = vmatprep.subr.mxu0 0.0
  %1724 = vmatpush1.msra.mxu0 0.0
  %1725 = vmatprep.mubr.f32.mxu0 0.0
  %1726 = vmatmul.mubr.f32.gmra.mrb[0].mxu0 %v1659
  %v1727 = vpop.f32.mrb[0].mxu0
  %v1728 = vadd.f32 %v1657, %v1727
  %v1729 = vpop.f32.mrb[0].mxu0
  %1730 = vdwg.mxu0
  %v1731 = vmax.f32 %v1728, 0.0
  %v1732 = vld [vmem:[%s4 + $0x540] sm:$0xff]
  %v1733 = vld [vmem:[%s4 + $0x548] sm:$0xff]
  %v1734 = vld [vmem:[%s4 + $0x550] sm:$0xff]
  %v1735 = vld [vmem:[%s4 + $0x558] sm:$0xff]
  %v1736 = vlaneseq
  %v1737 = vshrl.u32 %v1736, 7
  %v1738 = vsub.s32 5, %v1737
  %v1739 = vrot.slane %v26, %v1738
  %v1741 = vsel %vm128, %v1731, 0
  %1743 = vmatprep.subr.mxu0 0.0
  %1744 = vmatpush1.msra.mxu0 %v1732
  %1745 = vmatprep.subr.mxu0 0.0
  %1746 = vmatpush1.msra.mxu0 %v1733
  %1747 = vmatprep.subr.mxu0 0.0
  %1748 = vmatpush1.msra.mxu0 %v1734
  %1749 = vmatprep.subr.mxu0 0.0
  %1750 = vmatpush1.msra.mxu0 %v1735
  %1751 = vmatprep.subr.mxu0 0.0
  %1752 = vmatpush1.msra.mxu0 0.0
  %1753 = vmatprep.subr.mxu0 0.0
  %1754 = vmatpush1.msra.mxu0 0.0
  %1755 = vmatprep.subr.mxu0 0.0
  %1756 = vmatpush1.msra.mxu0 0.0
  %1757 = vmatprep.subr.mxu0 0.0
  %1758 = vmatpush1.msra.mxu0 0.0
  %1759 = vmatprep.subr.mxu0 0.0
  %1760 = vmatpush1.msra.mxu0 0.0
  %1761 = vmatprep.subr.mxu0 0.0
  %1762 = vmatpush1.msra.mxu0 0.0
  %1763 = vmatprep.subr.mxu0 0.0
  %1764 = vmatpush1.msra.mxu0 0.0
  %1765 = vmatprep.subr.mxu0 0.0
  %1766 = vmatpush1.msra.mxu0 0.0
  %1767 = vmatprep.subr.mxu0 0.0
  %1768 = vmatpush1.msra.mxu0 0.0
  %1769 = vmatprep.subr.mxu0 0.0
  %1770 = vmatpush1.msra.mxu0 0.0
  %1771 = vmatprep.subr.mxu0 0.0
  %1772 = vmatpush1.msra.mxu0 0.0
  %1773 = vmatprep.subr.mxu0 0.0
  %1774 = vmatpush1.msra.mxu0 0.0
  %1775 = vmatprep.subr.mxu0 0.0
  %1776 = vmatpush1.msra.mxu0 0.0
  %1777 = vmatprep.subr.mxu0 0.0
  %1778 = vmatpush1.msra.mxu0 0.0
  %1779 = vmatprep.subr.mxu0 0.0
  %1780 = vmatpush1.msra.mxu0 0.0
  %1781 = vmatprep.subr.mxu0 0.0
  %1782 = vmatpush1.msra.mxu0 0.0
  %1783 = vmatprep.subr.mxu0 0.0
  %1784 = vmatpush1.msra.mxu0 0.0
  %1785 = vmatprep.subr.mxu0 0.0
  %1786 = vmatpush1.msra.mxu0 0.0
  %1787 = vmatprep.subr.mxu0 0.0
  %1788 = vmatpush1.msra.mxu0 0.0
  %1789 = vmatprep.subr.mxu0 0.0
  %1790 = vmatpush1.msra.mxu0 0.0
  %1791 = vmatprep.subr.mxu0 0.0
  %1792 = vmatpush1.msra.mxu0 0.0
  %1793 = vmatprep.subr.mxu0 0.0
  %1794 = vmatpush1.msra.mxu0 0.0
  %1795 = vmatprep.subr.mxu0 0.0
  %1796 = vmatpush1.msra.mxu0 0.0
  %1797 = vmatprep.subr.mxu0 0.0
  %1798 = vmatpush1.msra.mxu0 0.0
  %1799 = vmatprep.subr.mxu0 0.0
  %1800 = vmatpush1.msra.mxu0 0.0
  %1801 = vmatprep.subr.mxu0 0.0
  %1802 = vmatpush1.msra.mxu0 0.0
  %1803 = vmatprep.subr.mxu0 0.0
  %1804 = vmatpush1.msra.mxu0 0.0
  %1805 = vmatprep.subr.mxu0 0.0
  %1806 = vmatpush1.msra.mxu0 0.0
  %1807 = vmatprep.mubr.f32.mxu0 0.0
  %1808 = vmatmul.mubr.f32.gmra.mrb[0].mxu0 %v1741
  %v1809 = vpop.f32.mrb[0].mxu0
  %v1810 = vadd.f32 %v1739, %v1809
  %v1811 = vpop.f32.mrb[0].mxu0
  %1812 = vdwg.mxu0
  %v1813 = vsel %vm128, %v1810, -inf
  %1814 = vmax.xlane.f32.xlu0 %v1813
  %v1815 = vpop.xlane.xlu0 %1814
  %v1816 = vsub.f32 %v1810, %v1815
  %v1817 = vmul.f32 %v1816, 1.442695
  %v1818 = vpow.pop %v1817
  %v1819 = vsel %vm128, %v1818, 0.0
  %1820 = vadd.xlane.f32.xlu0 %v1819
  %v1821 = vpop.xlane.xlu0 %1820
  %v1822 = vrcp.pop %v1821
  %v1823 = vmul.f32 %v1818, %v1822
  %1825 = vset.pattern.permute.xlu0 0
  %1826 = vperm.xlu0 %1825, %v1823
  %v1827 = vpop.permute.xlu0 %1826
  %v1829 = vmul.f32 %v1827, %v199
  %1830 = vset.pattern.permute.xlu0 1
  %1831 = vperm.xlu0 %1830, %v1823
  %v1832 = vpop.permute.xlu0 %1831
  %v1834 = vmul.f32 %v1832, %v515
  %v1835 = vadd.f32 %v1829, %v1834
  %1836 = vset.pattern.permute.xlu0 2
  %1837 = vperm.xlu0 %1836, %v1823
  %v1838 = vpop.permute.xlu0 %1837
  %v1840 = vmul.f32 %v1838, %v1629
  %v1841 = vadd.f32 %v1835, %v1840
  %v1842 = vld [vmem:[%s6] sm:$0xff]
  %v1843 = vld [vmem:[%s6 + $0x8] sm:$0xff]
  %v1844 = vld [vmem:[%s6 + $0x10] sm:$0xff]
  %v1845 = vld [vmem:[%s6 + $0x18] sm:$0xff]
  %v1846 = vld [vmem:[%s6 + $0x20] sm:$0xff]
  %v1847 = vld [vmem:[%s6 + $0x28] sm:$0xff]
  %v1848 = vld [vmem:[%s6 + $0x30] sm:$0xff]
  %v1849 = vld [vmem:[%s6 + $0x38] sm:$0xff]
  %s1850 = scalar_lea.vmem %s6, 64
  %v1851 = vld [vmem:[%s1850] ss:$8 sm:$0x3]
  %v1853 = vlaneseq
  %v1854 = vshrl.u32 %v1853, 7
  %v1855 = vsub.s32 0, %v1854
  %v1856 = vrot.slane %v1851, %v1855
  %v1857 = vlaneseq
  %v1858 = vshrl.u32 %v1857, 7
  %v1859 = vsub.s32 1, %v1858
  %v1860 = vrot.slane %v1851, %v1859
  %v1864 = vsel %vm128, %v1841, 0
  %1866 = vmatprep.subr.mxu0 %v1843
  %1867 = vmatpush1.msra.mxu0 %v1842
  %1868 = vmatprep.subr.mxu0 %v1845
  %1869 = vmatpush1.msra.mxu0 %v1844
  %1870 = vmatprep.subr.mxu0 %v1847
  %1871 = vmatpush1.msra.mxu0 %v1846
  %1872 = vmatprep.subr.mxu0 %v1849
  %1873 = vmatpush1.msra.mxu0 %v1848
  %1874 = vmatprep.subr.mxu0 0.0
  %1875 = vmatpush1.msra.mxu0 0.0
  %1876 = vmatprep.subr.mxu0 0.0
  %1877 = vmatpush1.msra.mxu0 0.0
  %1878 = vmatprep.subr.mxu0 0.0
  %1879 = vmatpush1.msra.mxu0 0.0
  %1880 = vmatprep.subr.mxu0 0.0
  %1881 = vmatpush1.msra.mxu0 0.0
  %1882 = vmatprep.subr.mxu0 0.0
  %1883 = vmatpush1.msra.mxu0 0.0
  %1884 = vmatprep.subr.mxu0 0.0
  %1885 = vmatpush1.msra.mxu0 0.0
  %1886 = vmatprep.subr.mxu0 0.0
  %1887 = vmatpush1.msra.mxu0 0.0
  %1888 = vmatprep.subr.mxu0 0.0
  %1889 = vmatpush1.msra.mxu0 0.0
  %1890 = vmatprep.subr.mxu0 0.0
  %1891 = vmatpush1.msra.mxu0 0.0
  %1892 = vmatprep.subr.mxu0 0.0
  %1893 = vmatpush1.msra.mxu0 0.0
  %1894 = vmatprep.subr.mxu0 0.0
  %1895 = vmatpush1.msra.mxu0 0.0
  %1896 = vmatprep.subr.mxu0 0.0
  %1897 = vmatpush1.msra.mxu0 0.0
  %1898 = vmatprep.subr.mxu0 0.0
  %1899 = vmatpush1.msra.mxu0 0.0
  %1900 = vmatprep.subr.mxu0 0.0
  %1901 = vmatpush1.msra.mxu0 0.0
  %1902 = vmatprep.subr.mxu0 0.0
  %1903 = vmatpush1.msra.mxu0 0.0
  %1904 = vmatprep.subr.mxu0 0.0
  %1905 = vmatpush1.msra.mxu0 0.0
  %1906 = vmatprep.subr.mxu0 0.0
  %1907 = vmatpush1.msra.mxu0 0.0
  %1908 = vmatprep.subr.mxu0 0.0
  %1909 = vmatpush1.msra.mxu0 0.0
  %1910 = vmatprep.subr.mxu0 0.0
  %1911 = vmatpush1.msra.mxu0 0.0
  %1912 = vmatprep.subr.mxu0 0.0
  %1913 = vmatpush1.msra.mxu0 0.0
  %1914 = vmatprep.subr.mxu0 0.0
  %1915 = vmatpush1.msra.mxu0 0.0
  %1916 = vmatprep.subr.mxu0 0.0
  %1917 = vmatpush1.msra.mxu0 0.0
  %1918 = vmatprep.subr.mxu0 0.0
  %1919 = vmatpush1.msra.mxu0 0.0
  %1920 = vmatprep.subr.mxu0 0.0
  %1921 = vmatpush1.msra.mxu0 0.0
  %1922 = vmatprep.subr.mxu0 0.0
  %1923 = vmatpush1.msra.mxu0 0.0
  %1924 = vmatprep.subr.mxu0 0.0
  %1925 = vmatpush1.msra.mxu0 0.0
  %1926 = vmatprep.subr.mxu0 0.0
  %1927 = vmatpush1.msra.mxu0 0.0
  %1928 = vmatprep.subr.mxu0 0.0
  %1929 = vmatpush1.msra.mxu0 0.0
  %1930 = vmatprep.mubr.f32.mxu0 0.0
  %1931 = vmatmul.mubr.f32.gmra.mrb[0].mxu0 %v1864
  %v1932 = vpop.f32.mrb[0].mxu0
  %v1933 = vadd.f32 %v1856, %v1932
  %v1934 = vpop.f32.mrb[0].mxu0
  %v1935 = vadd.f32 %v1860, %v1934
  %1936 = vdwg.mxu0
  %v1937 = vmax.f32 %v1933, 0.0
  %v1938 = vmax.f32 %v1935, 0.0
  %v1939 = vld [vmem:[%s5 + $0x90] sm:$0xff]
  %v1940 = vld [vmem:[%s5 + $0x98] sm:$0xff]
  %v1941 = vld [vmem:[%s5 + $0xa0] sm:$0xff]
  %v1942 = vld [vmem:[%s5 + $0xa8] sm:$0xff]
  %v1943 = vld [vmem:[%s5 + $0xb0] sm:$0xff]
  %v1944 = vld [vmem:[%s5 + $0xb8] sm:$0xff]
  %v1945 = vld [vmem:[%s5 + $0xc0] sm:$0xff]
  %v1946 = vld [vmem:[%s5 + $0xc8] sm:$0xff]
  %v1947 = vld [vmem:[%s5 + $0xd0] sm:$0xff]
  %v1948 = vld [vmem:[%s5 + $0xd8] sm:$0xff]
  %v1949 = vld [vmem:[%s5 + $0xe0] sm:$0xff]
  %v1950 = vld [vmem:[%s5 + $0xe8] sm:$0xff]
  %v1951 = vld [vmem:[%s5 + $0xf0] sm:$0xff]
  %v1952 = vld [vmem:[%s5 + $0xf8] sm:$0xff]
  %v1953 = vld [vmem:[%s5 + $0x100] sm:$0xff]
  %v1954 = vld [vmem:[%s5 + $0x108] sm:$0xff]
  %v1955 = vld [vmem:[%s5 + $0x110] sm:$0xff]
  %v1956 = vld [vmem:[%s5 + $0x118] sm:$0xff]
  %v1957 = vld [vmem:[%s5 + $0x120] sm:$0xff]
  %v1958 = vld [vmem:[%s5 + $0x128] sm:$0xff]
  %v1959 = vld [vmem:[%s5 + $0x130] sm:$0xff]
  %v1960 = vld [vmem:[%s5 + $0x138] sm:$0xff]
  %v1961 = vld [vmem:[%s5 + $0x140] sm:$0xff]
  %v1962 = vld [vmem:[%s5 + $0x148] sm:$0xff]
  %v1963 = vld [vmem:[%s5 + $0x150] sm:$0xff]
  %v1964 = vld [vmem:[%s5 + $0x158] sm:$0xff]
  %v1965 = vld [vmem:[%s5 + $0x160] sm:$0xff]
  %v1966 = vld [vmem:[%s5 + $0x168] sm:$0xff]
  %v1967 = vld [vmem:[%s5 + $0x170] sm:$0xff]
  %v1968 = vld [vmem:[%s5 + $0x178] sm:$0xff]
  %v1969 = vld [vmem:[%s5 + $0x180] sm:$0xff]
  %v1970 = vld [vmem:[%s5 + $0x188] sm:$0xff]
  %v1971 = vlaneseq
  %v1972 = vshrl.u32 %v1971, 7
  %v1973 = vsub.s32 1, %v1972
  %v1974 = vrot.slane %v27, %v1973
  %1975 = vmatprep.subr.mxu0 0.0
  %1976 = vmatpush1.msra.mxu0 %v1939
  %1977 = vmatprep.subr.mxu0 0.0
  %1978 = vmatpush1.msra.mxu0 %v1940
  %1979 = vmatprep.subr.mxu0 0.0
  %1980 = vmatpush1.msra.mxu0 %v1941
  %1981 = vmatprep.subr.mxu0 0.0
  %1982 = vmatpush1.msra.mxu0 %v1942
  %1983 = vmatprep.subr.mxu0 0.0
  %1984 = vmatpush1.msra.mxu0 %v1943
  %1985 = vmatprep.subr.mxu0 0.0
  %1986 = vmatpush1.msra.mxu0 %v1944
  %1987 = vmatprep.subr.mxu0 0.0
  %1988 = vmatpush1.msra.mxu0 %v1945
  %1989 = vmatprep.subr.mxu0 0.0
  %1990 = vmatpush1.msra.mxu0 %v1946
  %1991 = vmatprep.subr.mxu0 0.0
  %1992 = vmatpush1.msra.mxu0 %v1947
  %1993 = vmatprep.subr.mxu0 0.0
  %1994 = vmatpush1.msra.mxu0 %v1948
  %1995 = vmatprep.subr.mxu0 0.0
  %1996 = vmatpush1.msra.mxu0 %v1949
  %1997 = vmatprep.subr.mxu0 0.0
  %1998 = vmatpush1.msra.mxu0 %v1950
  %1999 = vmatprep.subr.mxu0 0.0
  %2000 = vmatpush1.msra.mxu0 %v1951
  %2001 = vmatprep.subr.mxu0 0.0
  %2002 = vmatpush1.msra.mxu0 %v1952
  %2003 = vmatprep.subr.mxu0 0.0
  %2004 = vmatpush1.msra.mxu0 %v1953
  %2005 = vmatprep.subr.mxu0 0.0
  %2006 = vmatpush1.msra.mxu0 %v1954
  %2007 = vmatprep.subr.mxu0 0.0
  %2008 = vmatpush1.msra.mxu0 %v1955
  %2009 = vmatprep.subr.mxu0 0.0
  %2010 = vmatpush1.msra.mxu0 %v1956
  %2011 = vmatprep.subr.mxu0 0.0
  %2012 = vmatpush1.msra.mxu0 %v1957
  %2013 = vmatprep.subr.mxu0 0.0
  %2014 = vmatpush1.msra.mxu0 %v1958
  %2015 = vmatprep.subr.mxu0 0.0
  %2016 = vmatpush1.msra.mxu0 %v1959
  %2017 = vmatprep.subr.mxu0 0.0
  %2018 = vmatpush1.msra.mxu0 %v1960
  %2019 = vmatprep.subr.mxu0 0.0
  %2020 = vmatpush1.msra.mxu0 %v1961
  %2021 = vmatprep.subr.mxu0 0.0
  %2022 = vmatpush1.msra.mxu0 %v1962
  %2023 = vmatprep.subr.mxu0 0.0
  %2024 = vmatpush1.msra.mxu0 %v1963
  %2025 = vmatprep.subr.mxu0 0.0
  %2026 = vmatpush1.msra.mxu0 %v1964
  %2027 = vmatprep.subr.mxu0 0.0
  %2028 = vmatpush1.msra.mxu0 %v1965
  %2029 = vmatprep.subr.mxu0 0.0
  %2030 = vmatpush1.msra.mxu0 %v1966
  %2031 = vmatprep.subr.mxu0 0.0
  %2032 = vmatpush1.msra.mxu0 %v1967
  %2033 = vmatprep.subr.mxu0 0.0
  %2034 = vmatpush1.msra.mxu0 %v1968
  %2035 = vmatprep.subr.mxu0 0.0
  %2036 = vmatpush1.msra.mxu0 %v1969
  %2037 = vmatprep.subr.mxu0 0.0
  %2038 = vmatpush1.msra.mxu0 %v1970
  %2039 = vmatprep.mubr.f32.mxu0 %v1938
  %2040 = vmatmul.mubr.f32.gmra.mrb[0].mxu0 %v1937
  %v2041 = vpop.f32.mrb[0].mxu0
  %v2042 = vadd.f32 %v1974, %v2041
  %v2043 = vpop.f32.mrb[0].mxu0
  %2044 = vdwg.mxu0
  %v2045 = vmax.f32 %v2042, 0.0
  %v2046 = vld [vmem:[%s5 + $0x190] sm:$0xff]
  %v2047 = vld [vmem:[%s5 + $0x198] sm:$0xff]
  %v2048 = vld [vmem:[%s5 + $0x1a0] sm:$0xff]
  %v2049 = vld [vmem:[%s5 + $0x1a8] sm:$0xff]
  %v2050 = vld [vmem:[%s5 + $0x1b0] sm:$0xff]
  %v2051 = vld [vmem:[%s5 + $0x1b8] sm:$0xff]
  %v2052 = vld [vmem:[%s5 + $0x1c0] sm:$0xff]
  %v2053 = vld [vmem:[%s5 + $0x1c8] sm:$0xff]
  %v2054 = vld [vmem:[%s5 + $0x1d0] sm:$0xff]
  %v2055 = vld [vmem:[%s5 + $0x1d8] sm:$0xff]
  %v2056 = vld [vmem:[%s5 + $0x1e0] sm:$0xff]
  %v2057 = vld [vmem:[%s5 + $0x1e8] sm:$0xff]
  %v2058 = vld [vmem:[%s5 + $0x1f0] sm:$0xff]
  %v2059 = vld [vmem:[%s5 + $0x1f8] sm:$0xff]
  %v2060 = vld [vmem:[%s5 + $0x200] sm:$0xff]
  %v2061 = vld [vmem:[%s5 + $0x208] sm:$0xff]
  %v2062 = vlaneseq
  %v2063 = vshrl.u32 %v2062, 7
  %v2064 = vsub.s32 2, %v2063
  %v2065 = vrot.slane %v27, %v2064
  %2066 = vmatprep.subr.mxu0 0.0
  %2067 = vmatpush1.msra.mxu0 %v2046
  %2068 = vmatprep.subr.mxu0 0.0
  %2069 = vmatpush1.msra.mxu0 %v2047
  %2070 = vmatprep.subr.mxu0 0.0
  %2071 = vmatpush1.msra.mxu0 %v2048
  %2072 = vmatprep.subr.mxu0 0.0
  %2073 = vmatpush1.msra.mxu0 %v2049
  %2074 = vmatprep.subr.mxu0 0.0
  %2075 = vmatpush1.msra.mxu0 %v2050
  %2076 = vmatprep.subr.mxu0 0.0
  %2077 = vmatpush1.msra.mxu0 %v2051
  %2078 = vmatprep.subr.mxu0 0.0
  %2079 = vmatpush1.msra.mxu0 %v2052
  %2080 = vmatprep.subr.mxu0 0.0
  %2081 = vmatpush1.msra.mxu0 %v2053
  %2082 = vmatprep.subr.mxu0 0.0
  %2083 = vmatpush1.msra.mxu0 %v2054
  %2084 = vmatprep.subr.mxu0 0.0
  %2085 = vmatpush1.msra.mxu0 %v2055
  %2086 = vmatprep.subr.mxu0 0.0
  %2087 = vmatpush1.msra.mxu0 %v2056
  %2088 = vmatprep.subr.mxu0 0.0
  %2089 = vmatpush1.msra.mxu0 %v2057
  %2090 = vmatprep.subr.mxu0 0.0
  %2091 = vmatpush1.msra.mxu0 %v2058
  %2092 = vmatprep.subr.mxu0 0.0
  %2093 = vmatpush1.msra.mxu0 %v2059
  %2094 = vmatprep.subr.mxu0 0.0
  %2095 = vmatpush1.msra.mxu0 %v2060
  %2096 = vmatprep.subr.mxu0 0.0
  %2097 = vmatpush1.msra.mxu0 %v2061
  %2098 = vmatprep.subr.mxu0 0.0
  %2099 = vmatpush1.msra.mxu0 0.0
  %2100 = vmatprep.subr.mxu0 0.0
  %2101 = vmatpush1.msra.mxu0 0.0
  %2102 = vmatprep.subr.mxu0 0.0
  %2103 = vmatpush1.msra.mxu0 0.0
  %2104 = vmatprep.subr.mxu0 0.0
  %2105 = vmatpush1.msra.mxu0 0.0
  %2106 = vmatprep.subr.mxu0 0.0
  %2107 = vmatpush1.msra.mxu0 0.0
  %2108 = vmatprep.subr.mxu0 0.0
  %2109 = vmatpush1.msra.mxu0 0.0
  %2110 = vmatprep.subr.mxu0 0.0
  %2111 = vmatpush1.msra.mxu0 0.0
  %2112 = vmatprep.subr.mxu0 0.0
  %2113 = vmatpush1.msra.mxu0 0.0
  %2114 = vmatprep.subr.mxu0 0.0
  %2115 = vmatpush1.msra.mxu0 0.0
  %2116 = vmatprep.subr.mxu0 0.0
  %2117 = vmatpush1.msra.mxu0 0.0
  %2118 = vmatprep.subr.mxu0 0.0
  %2119 = vmatpush1.msra.mxu0 0.0
  %2120 = vmatprep.subr.mxu0 0.0
  %2121 = vmatpush1.msra.mxu0 0.0
  %2122 = vmatprep.subr.mxu0 0.0
  %2123 = vmatpush1.msra.mxu0 0.0
  %2124 = vmatprep.subr.mxu0 0.0
  %2125 = vmatpush1.msra.mxu0 0.0
  %2126 = vmatprep.subr.mxu0 0.0
  %2127 = vmatpush1.msra.mxu0 0.0
  %2128 = vmatprep.subr.mxu0 0.0
  %2129 = vmatpush1.msra.mxu0 0.0
  %2130 = vmatprep.mubr.f32.mxu0 0.0
  %2131 = vmatmul.mubr.f32.gmra.mrb[0].mxu0 %v2045
  %v2132 = vpop.f32.mrb[0].mxu0
  %v2133 = vadd.f32 %v2065, %v2132
  %v2134 = vpop.f32.mrb[0].mxu0
  %2135 = vdwg.mxu0
  %2136 = vmax.xlane.f32.xlu0 %v2133
  %v2137 = vpop.xlane.xlu0 %2136
  %v2138 = vsub.f32 %v2133, %v2137
  %v2139 = vmul.f32 %v2138, 1.442695
  %v2140 = vpow.pop %v2139
  %2141 = vadd.xlane.f32.xlu0 %v2140
  %v2142 = vpop.xlane.xlu0 %2141
  %v2143 = vrcp.pop %v2142
  %v2144 = vmul.f32 %v2140, %v2143
  %2145 = vst [vmem:[%s7] sm:$0xff] %v2144
  // Predicated region
  $region30: #{accident_prediction_forward.1} parent=0 // pred_check
    _
  $region31: #{accident_prediction_forward.1} parent=0 // pred_check_branch
    %2147 = sbr.rel (0) target = $region33
  $region32: #{accident_prediction_forward.1} parent=0 // pred_region
    _
  $region33: #{accident_prediction_forward.1} parent=0 // pred_fallthru
    _
  // Predicated region
  $region34: #{accident_prediction_forward.1} parent=0 // pred_check
    _
  $region35: #{accident_prediction_forward.1} parent=0 // pred_check_branch
    %2149 = sbr.rel (0) target = $region37
  $region36: #{accident_prediction_forward.1} parent=0 // pred_region
    _
  $region37: #{accident_prediction_forward.1} parent=0 // pred_fallthru
    _

</llo_original>
